<compile_context>
chip_gen: v6e
topology: v6e:2x2x1
jax: 0.10.0
libtpu: 0.0.40
codegen_flags: <defaults>
</compile_context>

<pallas_src>
import numpy as np
import jax
import jax.numpy as jnp
from jax.experimental import pallas as pl
from jax.experimental.pallas import tpu as pltpu

POOL_SIZES = (1, 2, 3, 6)
SMAX = 64  # padded pooled-pixel axis (>= 6*6 = 36, multiple of 8)


# ---------------------------------------------------------------------------
# Constant spatial operators (pure glue: derived from shapes only)
# ---------------------------------------------------------------------------
def adaptive_pool_matrix_1d(in_size, out_size):
    """P[h, i]: weight of input row h for adaptive-avg-pool output row i."""
    P = np.zeros((in_size, out_size), dtype=np.float32)
    for i in range(out_size):
        start = (i * in_size) // out_size
        end = -(-((i + 1) * in_size) // out_size)  # ceil
        P[start:end, i] = 1.0 / (end - start)
    return P


def bilinear_upsample_matrix_1d(in_size, out_size):
    """U[i, y]: weight of source row i for output row y (align_corners=True)."""
    U = np.zeros((in_size, out_size), dtype=np.float32)
    for y in range(out_size):
        if in_size == 1:
            U[0, y] = 1.0
        else:
            src = y * (in_size - 1) / (out_size - 1)
            y0 = int(np.floor(src))
            y1 = min(y0 + 1, in_size - 1)
            w = src - y0
            U[y0, y] += 1.0 - w
            U[y1, y] += w
    return U


def build_factored_spatial_matrices(H, W, smax=SMAX):
    """Per branch P2:(HW, s^2), U2:(s^2, HW); zero-padded & stacked to
    P_pad:(4, HW, smax), U_pad:(4, smax, HW)."""
    HW = H * W
    P_pad = np.zeros((4, HW, smax), dtype=np.float32)
    U_pad = np.zeros((4, smax, HW), dtype=np.float32)
    P_list, U_list = [], []
    for i, s in enumerate(POOL_SIZES):
        Pr = adaptive_pool_matrix_1d(H, s)
        Pc = adaptive_pool_matrix_1d(W, s)
        P2 = np.kron(Pr, Pc)                      # (HW, s*s)
        Ur = bilinear_upsample_matrix_1d(s, H)
        Uc = bilinear_upsample_matrix_1d(s, W)
        U2 = np.kron(Ur, Uc)                      # (s*s, HW)
        P_pad[i, :, : s * s] = P2
        U_pad[i, : s * s, :] = U2
        P_list.append(P2)
        U_list.append(U2)
    return P_list, U_list, jnp.asarray(P_pad), jnp.asarray(U_pad)


# ---------------------------------------------------------------------------
# Pallas kernel: one batch element per grid step
# ---------------------------------------------------------------------------
def ppm_kernel(x_ref, p_ref, u_ref, wbr_ref, wout_ref, beff_ref, o_ref, cat_ref):
    C = x_ref.shape[1]            # in_channels
    IC = wbr_ref.shape[0] // 4    # inter_channels
    x = x_ref[0]                  # (C, HW) bf16

    # identity part of the concat
    cat_ref[0:C, :] = x

    # all four branch 1x1 convs as a single (4*IC, C) x (C, HW) matmul
    z_all = jnp.dot(wbr_ref[...], x, preferred_element_type=jnp.float32)
    z_all = z_all.astype(jnp.bfloat16)                                   # (4*IC, HW)

    # per-branch factored spatial mixing: pool (HW -> s^2) then upsample back
    for s in range(4):
        z_s = z_all[IC * s: IC * (s + 1)]                                # (IC, HW)
        pooled = jnp.dot(z_s, p_ref[s],
                         preferred_element_type=jnp.float32)            # (IC, SMAX)
        f_s = jnp.dot(pooled.astype(jnp.bfloat16), u_ref[s],
                      preferred_element_type=jnp.float32)               # (IC, HW)
        cat_ref[C + IC * s: C + IC * (s + 1), :] = f_s.astype(jnp.bfloat16)

    # single output 1x1 conv over the full concat: (OC, 2C) x (2C, HW)
    out = jnp.dot(wout_ref[...], cat_ref[...],
                  preferred_element_type=jnp.float32)
    o_ref[0] = (out + beff_ref[...]).astype(o_ref.dtype)


def fast_pyramid_pooling(x_nchw, P_pad, U_pad, W_br, b_br, W_out, b_out):
    B, C, H, W = x_nchw.shape
    HW = H * W
    OC = W_out.shape[0]
    IC = W_br.shape[1]
    Smax = P_pad.shape[-1]

    # --- host-side parameter prep (runs once per call, outside the kernel) ---
    x = x_nchw.reshape(B, C, HW).astype(jnp.bfloat16)
    W_br_stacked = W_br.reshape(4 * IC, C).astype(jnp.bfloat16)
    W_out_bf = W_out.astype(jnp.bfloat16)
    # fold the branch biases through the (linear) output conv
    b_eff = b_out + sum(
        jnp.dot(W_out[:, C + IC * s: C + IC * (s + 1)], b_br[s])
        for s in range(4)
    )
    P_bf = P_pad.astype(jnp.bfloat16)
    U_bf = U_pad.astype(jnp.bfloat16)

    out = pl.pallas_call(
        ppm_kernel,
        out_shape=jax.ShapeDtypeStruct((B, OC, HW), jnp.float32),
        grid_spec=pltpu.PrefetchScalarGridSpec(
            num_scalar_prefetch=0,
            grid=(B,),
            in_specs=[
                pl.BlockSpec((1, C, HW), lambda b: (b, 0, 0)),       # x
                pl.BlockSpec((4, HW, Smax), lambda b: (0, 0, 0)),    # pool factors
                pl.BlockSpec((4, Smax, HW), lambda b: (0, 0, 0)),    # upsample factors
                pl.BlockSpec((4 * IC, C), lambda b: (0, 0)),         # stacked branch conv W
                pl.BlockSpec((OC, 2 * C), lambda b: (0, 0)),         # out conv W
                pl.BlockSpec((OC, 1), lambda b: (0, 0)),             # folded bias
            ],
            out_specs=pl.BlockSpec((1, OC, HW), lambda b: (b, 0, 0)),
            scratch_shapes=[pltpu.VMEM((2 * C, HW), jnp.bfloat16)],  # concat buffer
        ),
        compiler_params=pltpu.CompilerParams(
            dimension_semantics=("parallel",)),
    )(x, P_bf, U_bf, W_br_stacked, W_out_bf, b_eff)
    return out.reshape(B, OC, H, W)


# ---------------------------------------------------------------------------
# Pure-JAX f32 reference (unfused: pool -> conv(+bias) -> upsample -> cat -> conv)
# ---------------------------------------------------------------------------
def reference(x_nchw, P_list, U_list, W_br, b_br, W_out, b_out):
    B, C, H, W = x_nchw.shape
    HW = H * W
    xf = x_nchw.reshape(B, C, HW)
    feats = [xf]
    for s in range(4):
        pooled = jnp.einsum('bcp,pk->bck', xf, jnp.asarray(P_list[s]))
        z = jnp.einsum('oc,bck->bok', W_br[s], pooled) + b_br[s][None, :, :]
        feat = jnp.einsum('bok,kp->bop', z, jnp.asarray(U_list[s]))
        feats.append(feat)
    cat = jnp.concatenate(feats, axis=1)                       # (B, 2C, HW)
    out = jnp.einsum('oc,bcp->bop', W_out, cat) + b_out[None, :, :]
    return out.reshape(B, -1, H, W)


# ---------------------------------------------------------------------------
if __name__ == "__main__":
    B, in_channels, out_channels, H, W = 2, 128, 128, 16, 16
    inter_channels = in_channels // 4

    key = jax.random.PRNGKey(0)
    k_x, k_w, k_b, k_wo, k_bo = jax.random.split(key, 5)

    x = jax.random.normal(k_x, (B, in_channels, H, W), dtype=jnp.float32)

    # conv1..conv4: (inter, in, 1, 1) + bias; out: (out, 2*in, 1, 1) + bias.
    W_br = 0.05 * jax.random.normal(k_w, (4, inter_channels, in_channels), jnp.float32)
    b_br = 0.05 * jax.random.normal(k_b, (4, inter_channels, 1), jnp.float32)
    W_out = 0.05 * jax.random.normal(k_wo, (out_channels, 2 * in_channels), jnp.float32)
    b_out = 0.05 * jax.random.normal(k_bo, (out_channels, 1), jnp.float32)

    P_list, U_list, P_pad, U_pad = build_factored_spatial_matrices(H, W)

    y = fast_pyramid_pooling(x, P_pad, U_pad, W_br, b_br, W_out, b_out)
    y = jax.block_until_ready(y)

    y_ref = jax.block_until_ready(
        reference(x, P_list, U_list, W_br, b_br, W_out, b_out))

    # bf16 matmul operands with f32 accumulation -> relaxed (but tight-enough)
    # tolerance vs the f32 reference.
    np.testing.assert_allclose(np.asarray(y), np.asarray(y_ref),
                               rtol=2e-2, atol=2e-2)
    print("KERNEL_OK")
</pallas_src>

<mosaic_0001>
module attributes {stable_mosaic.version = 11 : i64} {
  func.func @ppm_kernel(%arg0: i32, %arg1: memref<1x128x256xbf16, #tpu.memory_space<vmem>>, %arg2: memref<4x256x64xbf16, #tpu.memory_space<vmem>>, %arg3: memref<4x64x256xbf16, #tpu.memory_space<vmem>>, %arg4: memref<128x128xbf16, #tpu.memory_space<vmem>>, %arg5: memref<128x256xbf16, #tpu.memory_space<vmem>>, %arg6: memref<128x1xf32, #tpu.memory_space<vmem>>, %arg7: memref<1x128x256xf32, #tpu.memory_space<vmem>>, %arg8: memref<256x256xbf16, #tpu.memory_space<vmem>>) attributes {dimension_semantics = [#tpu.dimension_semantics<parallel>], iteration_bounds = array<i64: 2>, scalar_prefetch = 0 : i64, scratch_operands = 1 : i64, tpu.core_type = #tpu.core_type<tc>, window_params = [{transform_indices = @transform_0, window_bounds = array<i64: 1, 128, 256>}, {pipeline_mode = #tpu.pipeline_mode<synchronous>, transform_indices = @transform_1, window_bounds = array<i64: 4, 256, 64>}, {pipeline_mode = #tpu.pipeline_mode<synchronous>, transform_indices = @transform_2, window_bounds = array<i64: 4, 64, 256>}, {pipeline_mode = #tpu.pipeline_mode<synchronous>, transform_indices = @transform_3, window_bounds = array<i64: 128, 128>}, {pipeline_mode = #tpu.pipeline_mode<synchronous>, transform_indices = @transform_4, window_bounds = array<i64: 128, 256>}, {pipeline_mode = #tpu.pipeline_mode<synchronous>, transform_indices = @transform_5, window_bounds = array<i64: 128, 1>}, {transform_indices = @transform_6, window_bounds = array<i64: 1, 128, 256>}]} {
    %c0 = arith.constant 0 : index
    %c0_0 = arith.constant 0 : index
    %c0_1 = arith.constant 0 : index
    %0 = vector.load %arg1[%c0, %c0_0, %c0_1] : memref<1x128x256xbf16, #tpu.memory_space<vmem>>, vector<1x128x256xbf16>
    %1 = vector.shape_cast %0 : vector<1x128x256xbf16> to vector<128x256xbf16>
    %c0_2 = arith.constant 0 : index
    %c0_3 = arith.constant 0 : index
    %2 = vector.load %arg8[%c0_2, %c0_3] : memref<256x256xbf16, #tpu.memory_space<vmem>>, vector<128x256xbf16>
    tpu.vector_store %arg8[%c0_2, %c0_3], %1 {strides = array<i32>} : memref<256x256xbf16, #tpu.memory_space<vmem>>, vector<128x256xbf16>,
    %c0_4 = arith.constant 0 : index
    %c0_5 = arith.constant 0 : index
    %3 = vector.load %arg4[%c0_4, %c0_5] : memref<128x128xbf16, #tpu.memory_space<vmem>>, vector<128x128xbf16>
    %cst = arith.constant dense<0.000000e+00> : vector<128x256xf32>
    %4 = tpu.matmul %3, %1, %cst {dimension_numbers = #tpu.dot_dimension_numbers<[1], [0], [0], [1], [0, 0, 1, 1], [], []>} : vector<128x128xbf16>, vector<128x256xbf16>, vector<128x256xf32> -> vector<128x256xf32>
    %5 = arith.truncf %4 : vector<128x256xf32> to vector<128x256xbf16>
    %6 = vector.extract_strided_slice %5 {offsets = [0, 0], sizes = [32, 256], strides = [1, 1]} : vector<128x256xbf16> to vector<32x256xbf16>
    %c0_6 = arith.constant 0 : index
    %c0_7 = arith.constant 0 : index
    %c0_8 = arith.constant 0 : index
    %7 = vector.load %arg2[%c0_6, %c0_7, %c0_8] : memref<4x256x64xbf16, #tpu.memory_space<vmem>>, vector<1x256x64xbf16>
    %8 = vector.shape_cast %7 : vector<1x256x64xbf16> to vector<256x64xbf16>
    %cst_9 = arith.constant dense<0.000000e+00> : vector<32x64xf32>
    %9 = tpu.matmul %6, %8, %cst_9 {dimension_numbers = #tpu.dot_dimension_numbers<[1], [0], [0], [1], [0, 0, 1, 1], [], []>} : vector<32x256xbf16>, vector<256x64xbf16>, vector<32x64xf32> -> vector<32x64xf32>
    %10 = arith.truncf %9 : vector<32x64xf32> to vector<32x64xbf16>
    %c0_10 = arith.constant 0 : index
    %c0_11 = arith.constant 0 : index
    %c0_12 = arith.constant 0 : index
    %11 = vector.load %arg3[%c0_10, %c0_11, %c0_12] : memref<4x64x256xbf16, #tpu.memory_space<vmem>>, vector<1x64x256xbf16>
    %12 = vector.shape_cast %11 : vector<1x64x256xbf16> to vector<64x256xbf16>
    %cst_13 = arith.constant dense<0.000000e+00> : vector<32x256xf32>
    %13 = tpu.matmul %10, %12, %cst_13 {dimension_numbers = #tpu.dot_dimension_numbers<[1], [0], [0], [1], [0, 0, 1, 1], [], []>} : vector<32x64xbf16>, vector<64x256xbf16>, vector<32x256xf32> -> vector<32x256xf32>
    %14 = arith.truncf %13 : vector<32x256xf32> to vector<32x256xbf16>
    %c128 = arith.constant 128 : index
    %c0_14 = arith.constant 0 : index
    %15 = vector.load %arg8[%c128, %c0_14] : memref<256x256xbf16, #tpu.memory_space<vmem>>, vector<32x256xbf16>
    tpu.vector_store %arg8[%c128, %c0_14], %14 {strides = array<i32>} : memref<256x256xbf16, #tpu.memory_space<vmem>>, vector<32x256xbf16>,
    %16 = vector.extract_strided_slice %5 {offsets = [32, 0], sizes = [32, 256], strides = [1, 1]} : vector<128x256xbf16> to vector<32x256xbf16>
    %c1 = arith.constant 1 : index
    %c0_15 = arith.constant 0 : index
    %c0_16 = arith.constant 0 : index
    %17 = vector.load %arg2[%c1, %c0_15, %c0_16] : memref<4x256x64xbf16, #tpu.memory_space<vmem>>, vector<1x256x64xbf16>
    %18 = vector.shape_cast %17 : vector<1x256x64xbf16> to vector<256x64xbf16>
    %cst_17 = arith.constant dense<0.000000e+00> : vector<32x64xf32>
    %19 = tpu.matmul %16, %18, %cst_17 {dimension_numbers = #tpu.dot_dimension_numbers<[1], [0], [0], [1], [0, 0, 1, 1], [], []>} : vector<32x256xbf16>, vector<256x64xbf16>, vector<32x64xf32> -> vector<32x64xf32>
    %20 = arith.truncf %19 : vector<32x64xf32> to vector<32x64xbf16>
    %c1_18 = arith.constant 1 : index
    %c0_19 = arith.constant 0 : index
    %c0_20 = arith.constant 0 : index
    %21 = vector.load %arg3[%c1_18, %c0_19, %c0_20] : memref<4x64x256xbf16, #tpu.memory_space<vmem>>, vector<1x64x256xbf16>
    %22 = vector.shape_cast %21 : vector<1x64x256xbf16> to vector<64x256xbf16>
    %cst_21 = arith.constant dense<0.000000e+00> : vector<32x256xf32>
    %23 = tpu.matmul %20, %22, %cst_21 {dimension_numbers = #tpu.dot_dimension_numbers<[1], [0], [0], [1], [0, 0, 1, 1], [], []>} : vector<32x64xbf16>, vector<64x256xbf16>, vector<32x256xf32> -> vector<32x256xf32>
    %24 = arith.truncf %23 : vector<32x256xf32> to vector<32x256xbf16>
    %c160 = arith.constant 160 : index
    %c0_22 = arith.constant 0 : index
    %25 = vector.load %arg8[%c160, %c0_22] : memref<256x256xbf16, #tpu.memory_space<vmem>>, vector<32x256xbf16>
    tpu.vector_store %arg8[%c160, %c0_22], %24 {strides = array<i32>} : memref<256x256xbf16, #tpu.memory_space<vmem>>, vector<32x256xbf16>,
    %26 = vector.extract_strided_slice %5 {offsets = [64, 0], sizes = [32, 256], strides = [1, 1]} : vector<128x256xbf16> to vector<32x256xbf16>
    %c2 = arith.constant 2 : index
    %c0_23 = arith.constant 0 : index
    %c0_24 = arith.constant 0 : index
    %27 = vector.load %arg2[%c2, %c0_23, %c0_24] : memref<4x256x64xbf16, #tpu.memory_space<vmem>>, vector<1x256x64xbf16>
    %28 = vector.shape_cast %27 : vector<1x256x64xbf16> to vector<256x64xbf16>
    %cst_25 = arith.constant dense<0.000000e+00> : vector<32x64xf32>
    %29 = tpu.matmul %26, %28, %cst_25 {dimension_numbers = #tpu.dot_dimension_numbers<[1], [0], [0], [1], [0, 0, 1, 1], [], []>} : vector<32x256xbf16>, vector<256x64xbf16>, vector<32x64xf32> -> vector<32x64xf32>
    %30 = arith.truncf %29 : vector<32x64xf32> to vector<32x64xbf16>
    %c2_26 = arith.constant 2 : index
    %c0_27 = arith.constant 0 : index
    %c0_28 = arith.constant 0 : index
    %31 = vector.load %arg3[%c2_26, %c0_27, %c0_28] : memref<4x64x256xbf16, #tpu.memory_space<vmem>>, vector<1x64x256xbf16>
    %32 = vector.shape_cast %31 : vector<1x64x256xbf16> to vector<64x256xbf16>
    %cst_29 = arith.constant dense<0.000000e+00> : vector<32x256xf32>
    %33 = tpu.matmul %30, %32, %cst_29 {dimension_numbers = #tpu.dot_dimension_numbers<[1], [0], [0], [1], [0, 0, 1, 1], [], []>} : vector<32x64xbf16>, vector<64x256xbf16>, vector<32x256xf32> -> vector<32x256xf32>
    %34 = arith.truncf %33 : vector<32x256xf32> to vector<32x256xbf16>
    %c192 = arith.constant 192 : index
    %c0_30 = arith.constant 0 : index
    %35 = vector.load %arg8[%c192, %c0_30] : memref<256x256xbf16, #tpu.memory_space<vmem>>, vector<32x256xbf16>
    tpu.vector_store %arg8[%c192, %c0_30], %34 {strides = array<i32>} : memref<256x256xbf16, #tpu.memory_space<vmem>>, vector<32x256xbf16>,
    %36 = vector.extract_strided_slice %5 {offsets = [96, 0], sizes = [32, 256], strides = [1, 1]} : vector<128x256xbf16> to vector<32x256xbf16>
    %c3 = arith.constant 3 : index
    %c0_31 = arith.constant 0 : index
    %c0_32 = arith.constant 0 : index
    %37 = vector.load %arg2[%c3, %c0_31, %c0_32] : memref<4x256x64xbf16, #tpu.memory_space<vmem>>, vector<1x256x64xbf16>
    %38 = vector.shape_cast %37 : vector<1x256x64xbf16> to vector<256x64xbf16>
    %cst_33 = arith.constant dense<0.000000e+00> : vector<32x64xf32>
    %39 = tpu.matmul %36, %38, %cst_33 {dimension_numbers = #tpu.dot_dimension_numbers<[1], [0], [0], [1], [0, 0, 1, 1], [], []>} : vector<32x256xbf16>, vector<256x64xbf16>, vector<32x64xf32> -> vector<32x64xf32>
    %40 = arith.truncf %39 : vector<32x64xf32> to vector<32x64xbf16>
    %c3_34 = arith.constant 3 : index
    %c0_35 = arith.constant 0 : index
    %c0_36 = arith.constant 0 : index
    %41 = vector.load %arg3[%c3_34, %c0_35, %c0_36] : memref<4x64x256xbf16, #tpu.memory_space<vmem>>, vector<1x64x256xbf16>
    %42 = vector.shape_cast %41 : vector<1x64x256xbf16> to vector<64x256xbf16>
    %cst_37 = arith.constant dense<0.000000e+00> : vector<32x256xf32>
    %43 = tpu.matmul %40, %42, %cst_37 {dimension_numbers = #tpu.dot_dimension_numbers<[1], [0], [0], [1], [0, 0, 1, 1], [], []>} : vector<32x64xbf16>, vector<64x256xbf16>, vector<32x256xf32> -> vector<32x256xf32>
    %44 = arith.truncf %43 : vector<32x256xf32> to vector<32x256xbf16>
    %c224 = arith.constant 224 : index
    %c0_38 = arith.constant 0 : index
    %45 = vector.load %arg8[%c224, %c0_38] : memref<256x256xbf16, #tpu.memory_space<vmem>>, vector<32x256xbf16>
    tpu.vector_store %arg8[%c224, %c0_38], %44 {strides = array<i32>} : memref<256x256xbf16, #tpu.memory_space<vmem>>, vector<32x256xbf16>,
    %c0_39 = arith.constant 0 : index
    %c0_40 = arith.constant 0 : index
    %46 = vector.load %arg5[%c0_39, %c0_40] : memref<128x256xbf16, #tpu.memory_space<vmem>>, vector<128x256xbf16>
    %c0_41 = arith.constant 0 : index
    %c0_42 = arith.constant 0 : index
    %47 = vector.load %arg8[%c0_41, %c0_42] : memref<256x256xbf16, #tpu.memory_space<vmem>>, vector<256x256xbf16>
    %cst_43 = arith.constant dense<0.000000e+00> : vector<128x256xf32>
    %48 = tpu.matmul %46, %47, %cst_43 {dimension_numbers = #tpu.dot_dimension_numbers<[1], [0], [0], [1], [0, 0, 1, 1], [], []>} : vector<128x256xbf16>, vector<256x256xbf16>, vector<128x256xf32> -> vector<128x256xf32>
    %c0_44 = arith.constant 0 : index
    %c0_45 = arith.constant 0 : index
    %49 = vector.load %arg6[%c0_44, %c0_45] : memref<128x1xf32, #tpu.memory_space<vmem>>, vector<128x1xf32>
    %50 = vector.broadcast %49 : vector<128x1xf32> to vector<128x256xf32>
    %51 = arith.addf %48, %50 : vector<128x256xf32>
    %c0_46 = arith.constant 0 : index
    %c0_47 = arith.constant 0 : index
    %c0_48 = arith.constant 0 : index
    %52 = vector.load %arg7[%c0_46, %c0_47, %c0_48] : memref<1x128x256xf32, #tpu.memory_space<vmem>>, vector<1x128x256xf32>
    %53 = vector.shape_cast %52 : vector<1x128x256xf32> to vector<128x256xf32>
    %54 = vector.shape_cast %51 : vector<128x256xf32> to vector<1x128x256xf32>
    tpu.vector_store %arg7[%c0_46, %c0_47, %c0_48], %54 {strides = array<i32>} : memref<1x128x256xf32, #tpu.memory_space<vmem>>, vector<1x128x256xf32>,
    return
  }
  func.func @transform_0(%arg0: i32) -> (i32, i32, i32) {
    %c0_i32 = arith.constant 0 : i32
    %c0_i32_0 = arith.constant 0 : i32
    %c0_i32_1 = arith.constant 0 : i32
    return %arg0, %c0_i32, %c0_i32_0 : i32, i32, i32
  }
  func.func @transform_1(%arg0: i32) -> (i32, i32, i32) {
    %c0_i32 = arith.constant 0 : i32
    %c0_i32_0 = arith.constant 0 : i32
    %c0_i32_1 = arith.constant 0 : i32
    %c0_i32_2 = arith.constant 0 : i32
    return %c0_i32, %c0_i32_0, %c0_i32_1 : i32, i32, i32
  }
  func.func @transform_2(%arg0: i32) -> (i32, i32, i32) {
    %c0_i32 = arith.constant 0 : i32
    %c0_i32_0 = arith.constant 0 : i32
    %c0_i32_1 = arith.constant 0 : i32
    %c0_i32_2 = arith.constant 0 : i32
    return %c0_i32, %c0_i32_0, %c0_i32_1 : i32, i32, i32
  }
  func.func @transform_3(%arg0: i32) -> (i32, i32) {
    %c0_i32 = arith.constant 0 : i32
    %c0_i32_0 = arith.constant 0 : i32
    %c0_i32_1 = arith.constant 0 : i32
    return %c0_i32, %c0_i32_0 : i32, i32
  }
  func.func @transform_4(%arg0: i32) -> (i32, i32) {
    %c0_i32 = arith.constant 0 : i32
    %c0_i32_0 = arith.constant 0 : i32
    %c0_i32_1 = arith.constant 0 : i32
    return %c0_i32, %c0_i32_0 : i32, i32
  }
  func.func @transform_5(%arg0: i32) -> (i32, i32) {
    %c0_i32 = arith.constant 0 : i32
    %c0_i32_0 = arith.constant 0 : i32
    %c0_i32_1 = arith.constant 0 : i32
    return %c0_i32, %c0_i32_0 : i32, i32
  }
  func.func @transform_6(%arg0: i32) -> (i32, i32, i32) {
    %c0_i32 = arith.constant 0 : i32
    %c0_i32_0 = arith.constant 0 : i32
    %c0_i32_1 = arith.constant 0 : i32
    return %arg0, %c0_i32, %c0_i32_0 : i32, i32, i32
  }
}

</mosaic_0001>

<llo_original>
// kernel: tpu_custom_call.1
$region0: #{tpu_custom_call.1}
  #allocation0 [shape = 'u32[]', space=smem, size = 0x4, offset = 0x4, fixed_abs, tag = 'smem constant byte address 0x4 - core index']
  #allocation1 [shape = 'u32[144,128]{1,0:T(1,128)}', space=vmem, size = 0x12000, scoped, tag = 'internal scratch']
  #allocation2 [shape = 'bf16[256,256]{1,0:T(8,128)(2,1)}', space=vmem, size = 0x20000, scoped, tag = 'scratch operand']
  %s0 = inlined_call_operand.vmem [shape: bf16[2,128,256], index: 0, kind: input, shape index: {}]
  %s1 = inlined_call_operand.vmem [shape: bf16[4,256,64], index: 1, kind: input, shape index: {}]
  %s2 = inlined_call_operand.vmem [shape: bf16[4,64,256], index: 2, kind: input, shape index: {}]
  %s3 = inlined_call_operand.vmem [shape: bf16[128,128], index: 3, kind: input, shape index: {}]
  %s4 = inlined_call_operand.vmem [shape: bf16[128,256], index: 4, kind: input, shape index: {}]
  %s5 = inlined_call_operand.vmem [shape: f32[128,1], index: 5, kind: input, shape index: {}]
  %s6 = inlined_call_operand.hbm [shape: f32[2,128,256], index: 6, kind: output, shape index: {}]
  %s7 = sld [smem:[#allocation0]]
  $region57: #{tpu_custom_call.1} parent=0
    _
  %s9 = ssub.s32 1, %s7
  %s10 = scalar_select 0, %s9, %s7
  $region1: #{tpu_custom_call.1} parent=0
    #allocation3 [shape = 'u8[262144]{0}', space=vmem, size = 0x40000, scoped, tag = 'output window, operand 0']
    #allocation4 [shape = 's32[2]{0}', space=sflag, size = 0x8, scoped, tag = 'scoped memory for tpu_custom_call.1']
    %11 = vsyncpa [#allocation4], 0
    %s12 = scalar_lea.sflag [#allocation4], 1
    %13 = vsyncpa %s12, 0
    loop: start=0, step=1, limit=4
    $region2: #{tpu_custom_call.1} parent=1 // loop_pre_header
      _
    $region3: #{tpu_custom_call.1} parent=1 // loop_header
      %s15 = sphi 0, %s19
      %p16 = scmp.ge.s32.totalorder %s15, 4
      %s25 = sphi 0, %s27
      %s28 = sphi 0, %s25
      %s29 = sphi 0, %s28
      %s45 = sphi 0, %s29
      %s49 = sphi 0, %s49
      %s51 = sphi 0, %s49
      %s52 = sphi 0, %s51
      %s66 = sphi 0, %s52
      %s70 = sphi 0, %s70
      %s72 = sphi 0, %s70
      %s73 = sphi 0, %s72
      %s87 = sphi 0, %s73
      %s91 = sphi 0, %s91
      %s93 = sphi 0, %s91
      %s94 = sphi 0, %s93
      %s108 = sphi 0, %s94
      %s112 = sphi 0, %s112
      %s114 = sphi 0, %s112
      %s115 = sphi 0, %s114
      %s129 = sphi 0, %s115
      %s133 = sphi 0, %s133
      %s135 = sphi 0, %s133
      %s136 = sphi 0, %s135
      %s150 = sphi 0, %s136
      %s156 = sphi 0, %s158
      %s159 = sphi 0, %s156
      %s160 = sphi 0, %s159
      %s176 = sphi 0, %s160
    $region4: #{tpu_custom_call.1} parent=1 // loop_header_branch
      %18 = sbr.rel (%p16) target = $region8
    $region5: #{tpu_custom_call.1} parent=1 // loop_body
      %s20 = ssub.s32 %s15, 1
      %s21 = ssub.s32 %s15, 2
      %s22 = sadd.s32 %s15, 1
      %s23 = ssub.s32 %s15, %s22
      %p24 = scmp.eq.s32.totalorder %s23, 0
      %s26 = sadd.s32 %s25, 1
      %s27 = scalar_select %p24, %s25, %s26
      %p30 = pneg %p24
      %p31 = scmp.eq.s32.totalorder %s15, 1
      %p32 = por %p30, %p31
      %p33 = scmp.ne.s32.totalorder %s25, %s28
      %p34 = scmp.eq.s32.totalorder %s15, 0
      %p35 = por %p33, %p34
      %p36 = scmp.ne.s32.totalorder %s25, %s28
      %p37 = scmp.eq.s32.totalorder %s20, 1
      %p38 = por %p36, %p37
      %p39 = scmp.ne.s32.totalorder %s28, %s29
      %p40 = scmp.eq.s32.totalorder %s20, 0
      %p41 = por %p39, %p40
      %p42 = scmp.ne.s32.totalorder %s28, %s29
      %p43 = scmp.eq.s32.totalorder %s21, 1
      %p44 = por %p42, %p43
      %p46 = scmp.ne.s32.totalorder %s29, %s45
      %p47 = scmp.eq.s32.totalorder %s21, 0
      %p48 = por %p46, %p47
      %s50 = sadd.s32 %s49, 1
      %p53 = scmp.eq.s32.totalorder %s15, 1
      %p54 = scmp.ne.s32.totalorder %s49, %s51
      %p55 = scmp.eq.s32.totalorder %s15, 0
      %p56 = por %p54, %p55
      %p57 = scmp.ne.s32.totalorder %s49, %s51
      %p58 = scmp.eq.s32.totalorder %s20, 1
      %p59 = por %p57, %p58
      %p60 = scmp.ne.s32.totalorder %s51, %s52
      %p61 = scmp.eq.s32.totalorder %s20, 0
      %p62 = por %p60, %p61
      %p63 = scmp.ne.s32.totalorder %s51, %s52
      %p64 = scmp.eq.s32.totalorder %s21, 1
      %p65 = por %p63, %p64
      %p67 = scmp.ne.s32.totalorder %s52, %s66
      %p68 = scmp.eq.s32.totalorder %s21, 0
      %p69 = por %p67, %p68
      %s71 = sadd.s32 %s70, 1
      %p74 = scmp.eq.s32.totalorder %s15, 1
      %p75 = scmp.ne.s32.totalorder %s70, %s72
      %p76 = scmp.eq.s32.totalorder %s15, 0
      %p77 = por %p75, %p76
      %p78 = scmp.ne.s32.totalorder %s70, %s72
      %p79 = scmp.eq.s32.totalorder %s20, 1
      %p80 = por %p78, %p79
      %p81 = scmp.ne.s32.totalorder %s72, %s73
      %p82 = scmp.eq.s32.totalorder %s20, 0
      %p83 = por %p81, %p82
      %p84 = scmp.ne.s32.totalorder %s72, %s73
      %p85 = scmp.eq.s32.totalorder %s21, 1
      %p86 = por %p84, %p85
      %p88 = scmp.ne.s32.totalorder %s73, %s87
      %p89 = scmp.eq.s32.totalorder %s21, 0
      %p90 = por %p88, %p89
      %s92 = sadd.s32 %s91, 1
      %p95 = scmp.eq.s32.totalorder %s15, 1
      %p96 = scmp.ne.s32.totalorder %s91, %s93
      %p97 = scmp.eq.s32.totalorder %s15, 0
      %p98 = por %p96, %p97
      %p99 = scmp.ne.s32.totalorder %s91, %s93
      %p100 = scmp.eq.s32.totalorder %s20, 1
      %p101 = por %p99, %p100
      %p102 = scmp.ne.s32.totalorder %s93, %s94
      %p103 = scmp.eq.s32.totalorder %s20, 0
      %p104 = por %p102, %p103
      %p105 = scmp.ne.s32.totalorder %s93, %s94
      %p106 = scmp.eq.s32.totalorder %s21, 1
      %p107 = por %p105, %p106
      %p109 = scmp.ne.s32.totalorder %s94, %s108
      %p110 = scmp.eq.s32.totalorder %s21, 0
      %p111 = por %p109, %p110
      %s113 = sadd.s32 %s112, 1
      %p116 = scmp.eq.s32.totalorder %s15, 1
      %p117 = scmp.ne.s32.totalorder %s112, %s114
      %p118 = scmp.eq.s32.totalorder %s15, 0
      %p119 = por %p117, %p118
      %p120 = scmp.ne.s32.totalorder %s112, %s114
      %p121 = scmp.eq.s32.totalorder %s20, 1
      %p122 = por %p120, %p121
      %p123 = scmp.ne.s32.totalorder %s114, %s115
      %p124 = scmp.eq.s32.totalorder %s20, 0
      %p125 = por %p123, %p124
      %p126 = scmp.ne.s32.totalorder %s114, %s115
      %p127 = scmp.eq.s32.totalorder %s21, 1
      %p128 = por %p126, %p127
      %p130 = scmp.ne.s32.totalorder %s115, %s129
      %p131 = scmp.eq.s32.totalorder %s21, 0
      %p132 = por %p130, %p131
      %s134 = sadd.s32 %s133, 1
      %p137 = scmp.eq.s32.totalorder %s15, 1
      %p138 = scmp.ne.s32.totalorder %s133, %s135
      %p139 = scmp.eq.s32.totalorder %s15, 0
      %p140 = por %p138, %p139
      %p141 = scmp.ne.s32.totalorder %s133, %s135
      %p142 = scmp.eq.s32.totalorder %s20, 1
      %p143 = por %p141, %p142
      %p144 = scmp.ne.s32.totalorder %s135, %s136
      %p145 = scmp.eq.s32.totalorder %s20, 0
      %p146 = por %p144, %p145
      %p147 = scmp.ne.s32.totalorder %s135, %s136
      %p148 = scmp.eq.s32.totalorder %s21, 1
      %p149 = por %p147, %p148
      %p151 = scmp.ne.s32.totalorder %s136, %s150
      %p152 = scmp.eq.s32.totalorder %s21, 0
      %p153 = por %p151, %p152
      %s154 = ssub.s32 %s15, %s22
      %p155 = scmp.eq.s32.totalorder %s154, 0
      %s157 = sadd.s32 %s156, 1
      %s158 = scalar_select %p155, %s156, %s157
      %p161 = pneg %p155
      %p162 = scmp.eq.s32.totalorder %s15, 1
      %p163 = por %p161, %p162
      %p164 = scmp.ne.s32.totalorder %s156, %s159
      %p165 = scmp.eq.s32.totalorder %s15, 0
      %p166 = por %p164, %p165
      %p167 = scmp.ne.s32.totalorder %s156, %s159
      %p168 = scmp.eq.s32.totalorder %s20, 1
      %p169 = por %p167, %p168
      %p170 = scmp.ne.s32.totalorder %s159, %s160
      %p171 = scmp.eq.s32.totalorder %s20, 0
      %p172 = por %p170, %p171
      %p173 = scmp.ne.s32.totalorder %s159, %s160
      %p174 = scmp.eq.s32.totalorder %s21, 1
      %p175 = por %p173, %p174
      %p177 = scmp.ne.s32.totalorder %s160, %s176
      %p178 = scmp.eq.s32.totalorder %s21, 0
      %p179 = por %p177, %p178
      %p180 = scmp.le.s32.totalorder 1, %s15
      %p181 = scmp.lt.s32.totalorder %s15, 3
      %p182 = pnand %p180, %p181
      %p183 = pneg %p182
      // Predicated region
      $region9: #{tpu_custom_call.1} parent=5 // pred_check
        _
      $region10: #{tpu_custom_call.1} parent=5 // pred_check_branch
        %185 = sbr.rel (%p182) target = $region12
      $region11: #{tpu_custom_call.1} parent=5 // pred_region
        %s186 = ssub.s32 %s15, 1
        // Predicated region
        $region13: #{tpu_custom_call.1} parent=11 // pred_check
          %p187 = pneg %p62
        $region14: #{tpu_custom_call.1} parent=11 // pred_check_branch
          %189 = sbr.rel (%p187) target = $region16
        $region15: #{tpu_custom_call.1} parent=11 // pred_region
          _
        $region16: #{tpu_custom_call.1} parent=11 // pred_fallthru
          _
        // Predicated region
        $region17: #{tpu_custom_call.1} parent=11 // pred_check
          %p190 = pneg %p83
        $region18: #{tpu_custom_call.1} parent=11 // pred_check_branch
          %192 = sbr.rel (%p190) target = $region20
        $region19: #{tpu_custom_call.1} parent=11 // pred_region
          _
        $region20: #{tpu_custom_call.1} parent=11 // pred_fallthru
          _
        // Predicated region
        $region21: #{tpu_custom_call.1} parent=11 // pred_check
          %p193 = pneg %p104
        $region22: #{tpu_custom_call.1} parent=11 // pred_check_branch
          %195 = sbr.rel (%p193) target = $region24
        $region23: #{tpu_custom_call.1} parent=11 // pred_region
          _
        $region24: #{tpu_custom_call.1} parent=11 // pred_fallthru
          _
        // Predicated region
        $region25: #{tpu_custom_call.1} parent=11 // pred_check
          %p196 = pneg %p125
        $region26: #{tpu_custom_call.1} parent=11 // pred_check_branch
          %198 = sbr.rel (%p196) target = $region28
        $region27: #{tpu_custom_call.1} parent=11 // pred_region
          _
        $region28: #{tpu_custom_call.1} parent=11 // pred_fallthru
          _
        // Predicated region
        $region29: #{tpu_custom_call.1} parent=11 // pred_check
          %p199 = pneg %p146
        $region30: #{tpu_custom_call.1} parent=11 // pred_check_branch
          %201 = sbr.rel (%p199) target = $region32
        $region31: #{tpu_custom_call.1} parent=11 // pred_region
          _
        $region32: #{tpu_custom_call.1} parent=11 // pred_fallthru
          _
      $region12: #{tpu_custom_call.1} parent=5 // pred_fallthru
        _
      %p202 = scmp.lt.s32.totalorder %s15, 2
      // Predicated region
      $region33: #{tpu_custom_call.1} parent=5 // pred_check
        %p203 = pneg %p202
      $region34: #{tpu_custom_call.1} parent=5 // pred_check_branch
        %205 = sbr.rel (%p203) target = $region36
      $region35: #{tpu_custom_call.1} parent=5 // pred_region
        // Predicated region
        $region37: #{tpu_custom_call.1} parent=35 // pred_check
          %p206 = pneg %p35
        $region38: #{tpu_custom_call.1} parent=35 // pred_check_branch
          %208 = sbr.rel (%p206) target = $region40
        $region39: #{tpu_custom_call.1} parent=35 // pred_region
          %p209 = scmp.lt.s32.totalorder %s15, 1
          %s210 = scalar_select %p209, %s15, 1
          %s211 = smul.addr %s210, 32
          %s212 = smul.addr %s211, 4
          %s213 = scalar_lea.vmem %s0, %s212
        $region40: #{tpu_custom_call.1} parent=35 // pred_fallthru
          _
      $region36: #{tpu_custom_call.1} parent=5 // pred_fallthru
        _
      %p214 = scmp.le.s32.totalorder 1, %s15
      %p215 = scmp.lt.s32.totalorder %s15, 3
      %p216 = pnand %p214, %p215
      %p217 = pneg %p216
      // Predicated region
      $region41: #{tpu_custom_call.1} parent=5 // pred_check
        _
      $region42: #{tpu_custom_call.1} parent=5 // pred_check_branch
        %219 = sbr.rel (%p216) target = $region44
      $region43: #{tpu_custom_call.1} parent=5 // pred_region
        %s220 = ssub.s32 %s15, 1
        %p221 = scmp.lt.s32.totalorder %s20, 1
        %s222 = scalar_select %p221, %s20, 1
        %s223 = smul.addr %s222, 32
        %s224 = smul.addr %s223, 4
        %s225 = scalar_lea.vmem %s0, %s224
        %p226 = pneg %p41
        %p227 = pneg %p38
        %p228 = pneg %p62
        %p229 = pneg %p59
        %p230 = pneg %p83
        %p231 = pneg %p80
        %p232 = pneg %p104
        %p233 = pneg %p101
        %p234 = pneg %p125
        %p235 = pneg %p122
        %p236 = pneg %p146
        %p237 = pneg %p143
        %p238 = pneg %p172
        %p239 = pneg %p169
        %s240 = sand.u32 %s159, 1
        %s241 = scalar_lea.sflag [#allocation4], %s240
        %s242 = sand.u32 %s159, 1
        %s243 = smul.addr %s242, 256
        %s244 = scalar_lea.vmem [#allocation3], %s243
        %p245 = scmp.lt.s32.totalorder %s20, 1
        %s246 = scalar_select %p245, %s20, 1
        %s247 = smul.addr %s246, 32
        %s248 = smul.addr %s247, 4
        %s249 = scalar_lea.vmem %s0, %s248
        %v251 = vld [vmem:[%s249] sm:$0xff]
        %v252 = vld [vmem:[%s249 + $0x8] sm:$0xff]
        %v253 = vld [vmem:[%s249 + $0x10] sm:$0xff]
        %v254 = vld [vmem:[%s249 + $0x18] sm:$0xff]
        %v255 = vld [vmem:[%s249 + $0x20] sm:$0xff]
        %v256 = vld [vmem:[%s249 + $0x28] sm:$0xff]
        %v257 = vld [vmem:[%s249 + $0x30] sm:$0xff]
        %v258 = vld [vmem:[%s249 + $0x38] sm:$0xff]
        %v259 = vld [vmem:[%s249 + $0x40] sm:$0xff]
        %v260 = vld [vmem:[%s249 + $0x48] sm:$0xff]
        %v261 = vld [vmem:[%s249 + $0x50] sm:$0xff]
        %v262 = vld [vmem:[%s249 + $0x58] sm:$0xff]
        %v263 = vld [vmem:[%s249 + $0x60] sm:$0xff]
        %v264 = vld [vmem:[%s249 + $0x68] sm:$0xff]
        %v265 = vld [vmem:[%s249 + $0x70] sm:$0xff]
        %v266 = vld [vmem:[%s249 + $0x78] sm:$0xff]
        %267 = vst [vmem:[#allocation2] sm:$0xff] %v251
        %268 = vst [vmem:[#allocation2 + $0x8] sm:$0xff] %v252
        %269 = vst [vmem:[#allocation2 + $0x10] sm:$0xff] %v253
        %270 = vst [vmem:[#allocation2 + $0x18] sm:$0xff] %v254
        %271 = vst [vmem:[#allocation2 + $0x20] sm:$0xff] %v255
        %272 = vst [vmem:[#allocation2 + $0x28] sm:$0xff] %v256
        %273 = vst [vmem:[#allocation2 + $0x30] sm:$0xff] %v257
        %274 = vst [vmem:[#allocation2 + $0x38] sm:$0xff] %v258
        %275 = vst [vmem:[#allocation2 + $0x40] sm:$0xff] %v259
        %276 = vst [vmem:[#allocation2 + $0x48] sm:$0xff] %v260
        %277 = vst [vmem:[#allocation2 + $0x50] sm:$0xff] %v261
        %278 = vst [vmem:[#allocation2 + $0x58] sm:$0xff] %v262
        %279 = vst [vmem:[#allocation2 + $0x60] sm:$0xff] %v263
        %280 = vst [vmem:[#allocation2 + $0x68] sm:$0xff] %v264
        %281 = vst [vmem:[#allocation2 + $0x70] sm:$0xff] %v265
        %282 = vst [vmem:[#allocation2 + $0x78] sm:$0xff] %v266
        %v283 = vld [vmem:[%s3] sm:$0xf]
        %v284 = vld [vmem:[%s3 + $0x4] sm:$0xf]
        %v285 = vld [vmem:[%s3 + $0x8] sm:$0xf]
        %v286 = vld [vmem:[%s3 + $0xc] sm:$0xf]
        %v287 = vld [vmem:[%s3 + $0x10] sm:$0xf]
        %v288 = vld [vmem:[%s3 + $0x14] sm:$0xf]
        %v289 = vld [vmem:[%s3 + $0x18] sm:$0xf]
        %v290 = vld [vmem:[%s3 + $0x1c] sm:$0xf]
        %v291 = vld [vmem:[%s3 + $0x20] sm:$0xf]
        %v292 = vld [vmem:[%s3 + $0x24] sm:$0xf]
        %v293 = vld [vmem:[%s3 + $0x28] sm:$0xf]
        %v294 = vld [vmem:[%s3 + $0x2c] sm:$0xf]
        %v295 = vld [vmem:[%s3 + $0x30] sm:$0xf]
        %v296 = vld [vmem:[%s3 + $0x34] sm:$0xf]
        %v297 = vld [vmem:[%s3 + $0x38] sm:$0xf]
        %v298 = vld [vmem:[%s3 + $0x3c] sm:$0xf]
        %v315 = vunpack.c.l.b16 %v283
        %v316 = vunpack.c.l.b16 %v284
        %v317 = vunpack.c.l.b16 %v285
        %v318 = vunpack.c.l.b16 %v286
        %v319 = vunpack.c.l.b16 %v287
        %v320 = vunpack.c.l.b16 %v288
        %v321 = vunpack.c.l.b16 %v289
        %v322 = vunpack.c.l.b16 %v290
        %v323 = vunpack.c.l.b16 %v291
        %v324 = vunpack.c.l.b16 %v292
        %v325 = vunpack.c.l.b16 %v293
        %v326 = vunpack.c.l.b16 %v294
        %v327 = vunpack.c.l.b16 %v295
        %v328 = vunpack.c.l.b16 %v296
        %v329 = vunpack.c.l.b16 %v297
        %v330 = vunpack.c.l.b16 %v298
        %v331 = vpack.c.b16 %v316, %v315
        %v332 = vpack.c.b16 %v318, %v317
        %v333 = vpack.c.b16 %v320, %v319
        %v334 = vpack.c.b16 %v322, %v321
        %v335 = vpack.c.b16 %v324, %v323
        %v336 = vpack.c.b16 %v326, %v325
        %v337 = vpack.c.b16 %v328, %v327
        %v338 = vpack.c.b16 %v330, %v329
        %v363 = vunpack.c.l.b16 %v251
        %v364 = vunpack.c.h.b16 %v251
        %v365 = vunpack.c.l.b16 %v252
        %v366 = vunpack.c.h.b16 %v252
        %v367 = vunpack.c.l.b16 %v253
        %v368 = vunpack.c.h.b16 %v253
        %v369 = vunpack.c.l.b16 %v254
        %v370 = vunpack.c.h.b16 %v254
        %v371 = vunpack.c.l.b16 %v255
        %v372 = vunpack.c.h.b16 %v255
        %v373 = vunpack.c.l.b16 %v256
        %v374 = vunpack.c.h.b16 %v256
        %v375 = vunpack.c.l.b16 %v257
        %v376 = vunpack.c.h.b16 %v257
        %v377 = vunpack.c.l.b16 %v258
        %v378 = vunpack.c.h.b16 %v258
        %v379 = vunpack.c.l.b16 %v259
        %v380 = vunpack.c.h.b16 %v259
        %v381 = vunpack.c.l.b16 %v260
        %v382 = vunpack.c.h.b16 %v260
        %v383 = vunpack.c.l.b16 %v261
        %v384 = vunpack.c.h.b16 %v261
        %v385 = vunpack.c.l.b16 %v262
        %v386 = vunpack.c.h.b16 %v262
        %v387 = vunpack.c.l.b16 %v263
        %v388 = vunpack.c.h.b16 %v263
        %v389 = vunpack.c.l.b16 %v264
        %v390 = vunpack.c.h.b16 %v264
        %v391 = vunpack.c.l.b16 %v265
        %v392 = vunpack.c.h.b16 %v265
        %v393 = vunpack.c.l.b16 %v266
        %v394 = vunpack.c.h.b16 %v266
        %v395 = vpack.c.b16 %v365, %v363
        %v396 = vpack.c.b16 %v366, %v364
        %v397 = vpack.c.b16 %v369, %v367
        %v398 = vpack.c.b16 %v370, %v368
        %v399 = vpack.c.b16 %v373, %v371
        %v400 = vpack.c.b16 %v374, %v372
        %v401 = vpack.c.b16 %v377, %v375
        %v402 = vpack.c.b16 %v378, %v376
        %v403 = vpack.c.b16 %v381, %v379
        %v404 = vpack.c.b16 %v382, %v380
        %v405 = vpack.c.b16 %v385, %v383
        %v406 = vpack.c.b16 %v386, %v384
        %v407 = vpack.c.b16 %v389, %v387
        %v408 = vpack.c.b16 %v390, %v388
        %v409 = vpack.c.b16 %v393, %v391
        %v410 = vpack.c.b16 %v394, %v392
        %427 = vmatprep.subr.bf16.mxu0 %v410
        %428 = vmatpush1.bf16.msra.mxu0 %v409
        %429 = vmatprep.subr.bf16.mxu0 %v408
        %430 = vmatpush1.bf16.msra.mxu0 %v407
        %431 = vmatprep.subr.bf16.mxu0 %v406
        %432 = vmatpush1.bf16.msra.mxu0 %v405
        %433 = vmatprep.subr.bf16.mxu0 %v404
        %434 = vmatpush1.bf16.msra.mxu0 %v403
        %435 = vmatprep.subr.bf16.mxu0 %v402
        %436 = vmatpush1.bf16.msra.mxu0 %v401
        %437 = vmatprep.subr.bf16.mxu0 %v400
        %438 = vmatpush1.bf16.msra.mxu0 %v399
        %439 = vmatprep.subr.bf16.mxu0 %v398
        %440 = vmatpush1.bf16.msra.mxu0 %v397
        %441 = vmatprep.subr.bf16.mxu0 %v396
        %442 = vmatpush1.bf16.msra.mxu0 %v395
        %443 = vmatprep.subr.bf16.mxu0 0
        %444 = vmatpush2.bf16.msra.mxu0 0
        %445 = vmatprep.subr.bf16.mxu0 0
        %446 = vmatpush2.bf16.msra.mxu0 0
        %447 = vmatprep.subr.bf16.mxu0 0
        %448 = vmatpush2.bf16.msra.mxu0 0
        %449 = vmatprep.subr.bf16.mxu0 0
        %450 = vmatpush2.bf16.msra.mxu0 0
        %451 = vmatprep.subr.bf16.mxu0 0
        %452 = vmatpush2.bf16.msra.mxu0 0
        %453 = vmatprep.subr.bf16.mxu0 0
        %454 = vmatpush2.bf16.msra.mxu0 0
        %455 = vmatprep.subr.bf16.mxu0 0
        %456 = vmatpush2.bf16.msra.mxu0 0
        %457 = vmatprep.subr.bf16.mxu0 0
        %458 = vmatpush2.bf16.msra.mxu0 0
        %459 = vmatprep.mubr.bf16.mxu0 0
        %460 = vmatmul.mubr.bf16.gmra.mxu0 %v331
        %v461 = vpop.f32.mrf.mxu0
        %v462 = vadd.f32 0.0, %v461
        %v463 = vpop.f32.mrf.mxu0
        %v464 = vadd.f32 0.0, %v463
        %v465 = vpop.f32.mrf.mxu0
        %v466 = vadd.f32 0.0, %v465
        %v467 = vpop.f32.mrf.mxu0
        %v468 = vadd.f32 0.0, %v467
        %469 = vmatprep.mubr.bf16.mxu0 0
        %470 = vmatmul.mubr.bf16.gmra.mxu0 %v332
        %v471 = vpop.f32.mrf.mxu0
        %v472 = vadd.f32 0.0, %v471
        %v473 = vpop.f32.mrf.mxu0
        %v474 = vadd.f32 0.0, %v473
        %v475 = vpop.f32.mrf.mxu0
        %v476 = vadd.f32 0.0, %v475
        %v477 = vpop.f32.mrf.mxu0
        %v478 = vadd.f32 0.0, %v477
        %479 = vmatprep.mubr.bf16.mxu0 0
        %480 = vmatmul.mubr.bf16.gmra.mxu0 %v333
        %v481 = vpop.f32.mrf.mxu0
        %v482 = vadd.f32 0.0, %v481
        %v483 = vpop.f32.mrf.mxu0
        %v484 = vadd.f32 0.0, %v483
        %v485 = vpop.f32.mrf.mxu0
        %v486 = vadd.f32 0.0, %v485
        %v487 = vpop.f32.mrf.mxu0
        %v488 = vadd.f32 0.0, %v487
        %489 = vmatprep.mubr.bf16.mxu0 0
        %490 = vmatmul.mubr.bf16.gmra.mxu0 %v334
        %v491 = vpop.f32.mrf.mxu0
        %v492 = vadd.f32 0.0, %v491
        %v493 = vpop.f32.mrf.mxu0
        %v494 = vadd.f32 0.0, %v493
        %v495 = vpop.f32.mrf.mxu0
        %v496 = vadd.f32 0.0, %v495
        %v497 = vpop.f32.mrf.mxu0
        %v498 = vadd.f32 0.0, %v497
        %499 = vmatprep.mubr.bf16.mxu0 0
        %500 = vmatmul.mubr.bf16.gmra.mxu0 %v335
        %v501 = vpop.f32.mrf.mxu0
        %v502 = vadd.f32 0.0, %v501
        %v503 = vpop.f32.mrf.mxu0
        %v504 = vadd.f32 0.0, %v503
        %v505 = vpop.f32.mrf.mxu0
        %v506 = vadd.f32 0.0, %v505
        %v507 = vpop.f32.mrf.mxu0
        %v508 = vadd.f32 0.0, %v507
        %509 = vmatprep.mubr.bf16.mxu0 0
        %510 = vmatmul.mubr.bf16.gmra.mxu0 %v336
        %v511 = vpop.f32.mrf.mxu0
        %v512 = vadd.f32 0.0, %v511
        %v513 = vpop.f32.mrf.mxu0
        %v514 = vadd.f32 0.0, %v513
        %v515 = vpop.f32.mrf.mxu0
        %v516 = vadd.f32 0.0, %v515
        %v517 = vpop.f32.mrf.mxu0
        %v518 = vadd.f32 0.0, %v517
        %519 = vmatprep.mubr.bf16.mxu0 0
        %520 = vmatmul.mubr.bf16.gmra.mxu0 %v337
        %v521 = vpop.f32.mrf.mxu0
        %v522 = vadd.f32 0.0, %v521
        %v523 = vpop.f32.mrf.mxu0
        %v524 = vadd.f32 0.0, %v523
        %v525 = vpop.f32.mrf.mxu0
        %v526 = vadd.f32 0.0, %v525
        %v527 = vpop.f32.mrf.mxu0
        %v528 = vadd.f32 0.0, %v527
        %529 = vmatprep.mubr.bf16.mxu0 0
        %530 = vmatmul.mubr.bf16.gmra.mxu0 %v338
        %v531 = vpop.f32.mrf.mxu0
        %v532 = vadd.f32 0.0, %v531
        %v533 = vpop.f32.mrf.mxu0
        %v534 = vadd.f32 0.0, %v533
        %v535 = vpop.f32.mrf.mxu0
        %v536 = vadd.f32 0.0, %v535
        %v537 = vpop.f32.mrf.mxu0
        %v538 = vadd.f32 0.0, %v537
        %539 = vdwg.mxu0
        %v540 = vpack.c.bf16 %v466, %v462
        %v541 = vpack.c.bf16 %v468, %v464
        %v542 = vpack.c.bf16 %v476, %v472
        %v543 = vpack.c.bf16 %v478, %v474
        %v544 = vpack.c.bf16 %v486, %v482
        %v545 = vpack.c.bf16 %v488, %v484
        %v546 = vpack.c.bf16 %v496, %v492
        %v547 = vpack.c.bf16 %v498, %v494
        %v548 = vpack.c.bf16 %v506, %v502
        %v549 = vpack.c.bf16 %v508, %v504
        %v550 = vpack.c.bf16 %v516, %v512
        %v551 = vpack.c.bf16 %v518, %v514
        %v552 = vpack.c.bf16 %v526, %v522
        %v553 = vpack.c.bf16 %v528, %v524
        %v554 = vpack.c.bf16 %v536, %v532
        %v555 = vpack.c.bf16 %v538, %v534
        %v556 = vld [vmem:[%s1] sm:$0xf]
        %v557 = vld [vmem:[%s1 + $0x4] sm:$0xf]
        %v558 = vld [vmem:[%s1 + $0x8] sm:$0xf]
        %v559 = vld [vmem:[%s1 + $0xc] sm:$0xf]
        %v560 = vld [vmem:[%s1 + $0x10] sm:$0xf]
        %v561 = vld [vmem:[%s1 + $0x14] sm:$0xf]
        %v562 = vld [vmem:[%s1 + $0x18] sm:$0xf]
        %v563 = vld [vmem:[%s1 + $0x1c] sm:$0xf]
        %v564 = vld [vmem:[%s1 + $0x20] sm:$0xf]
        %v565 = vld [vmem:[%s1 + $0x24] sm:$0xf]
        %v566 = vld [vmem:[%s1 + $0x28] sm:$0xf]
        %v567 = vld [vmem:[%s1 + $0x2c] sm:$0xf]
        %v568 = vld [vmem:[%s1 + $0x30] sm:$0xf]
        %v569 = vld [vmem:[%s1 + $0x34] sm:$0xf]
        %v570 = vld [vmem:[%s1 + $0x38] sm:$0xf]
        %v571 = vld [vmem:[%s1 + $0x3c] sm:$0xf]
        %v572 = vld [vmem:[%s1 + $0x40] sm:$0xf]
        %v573 = vld [vmem:[%s1 + $0x44] sm:$0xf]
        %v574 = vld [vmem:[%s1 + $0x48] sm:$0xf]
        %v575 = vld [vmem:[%s1 + $0x4c] sm:$0xf]
        %v576 = vld [vmem:[%s1 + $0x50] sm:$0xf]
        %v577 = vld [vmem:[%s1 + $0x54] sm:$0xf]
        %v578 = vld [vmem:[%s1 + $0x58] sm:$0xf]
        %v579 = vld [vmem:[%s1 + $0x5c] sm:$0xf]
        %v580 = vld [vmem:[%s1 + $0x60] sm:$0xf]
        %v581 = vld [vmem:[%s1 + $0x64] sm:$0xf]
        %v582 = vld [vmem:[%s1 + $0x68] sm:$0xf]
        %v583 = vld [vmem:[%s1 + $0x6c] sm:$0xf]
        %v584 = vld [vmem:[%s1 + $0x70] sm:$0xf]
        %v585 = vld [vmem:[%s1 + $0x74] sm:$0xf]
        %v586 = vld [vmem:[%s1 + $0x78] sm:$0xf]
        %v587 = vld [vmem:[%s1 + $0x7c] sm:$0xf]
        %v620 = vunpack.c.l.b16 %v556
        %v621 = vunpack.c.l.b16 %v557
        %v622 = vunpack.c.l.b16 %v558
        %v623 = vunpack.c.l.b16 %v559
        %v624 = vunpack.c.l.b16 %v560
        %v625 = vunpack.c.l.b16 %v561
        %v626 = vunpack.c.l.b16 %v562
        %v627 = vunpack.c.l.b16 %v563
        %v628 = vunpack.c.l.b16 %v564
        %v629 = vunpack.c.l.b16 %v565
        %v630 = vunpack.c.l.b16 %v566
        %v631 = vunpack.c.l.b16 %v567
        %v632 = vunpack.c.l.b16 %v568
        %v633 = vunpack.c.l.b16 %v569
        %v634 = vunpack.c.l.b16 %v570
        %v635 = vunpack.c.l.b16 %v571
        %v636 = vunpack.c.l.b16 %v572
        %v637 = vunpack.c.l.b16 %v573
        %v638 = vunpack.c.l.b16 %v574
        %v639 = vunpack.c.l.b16 %v575
        %v640 = vunpack.c.l.b16 %v576
        %v641 = vunpack.c.l.b16 %v577
        %v642 = vunpack.c.l.b16 %v578
        %v643 = vunpack.c.l.b16 %v579
        %v644 = vunpack.c.l.b16 %v580
        %v645 = vunpack.c.l.b16 %v581
        %v646 = vunpack.c.l.b16 %v582
        %v647 = vunpack.c.l.b16 %v583
        %v648 = vunpack.c.l.b16 %v584
        %v649 = vunpack.c.l.b16 %v585
        %v650 = vunpack.c.l.b16 %v586
        %v651 = vunpack.c.l.b16 %v587
        %v652 = vpack.c.b16 %v621, %v620
        %v653 = vpack.c.b16 %v623, %v622
        %v654 = vpack.c.b16 %v625, %v624
        %v655 = vpack.c.b16 %v627, %v626
        %v656 = vpack.c.b16 %v629, %v628
        %v657 = vpack.c.b16 %v631, %v630
        %v658 = vpack.c.b16 %v633, %v632
        %v659 = vpack.c.b16 %v635, %v634
        %v660 = vpack.c.b16 %v637, %v636
        %v661 = vpack.c.b16 %v639, %v638
        %v662 = vpack.c.b16 %v641, %v640
        %v663 = vpack.c.b16 %v643, %v642
        %v664 = vpack.c.b16 %v645, %v644
        %v665 = vpack.c.b16 %v647, %v646
        %v666 = vpack.c.b16 %v649, %v648
        %v667 = vpack.c.b16 %v651, %v650
        %684 = vmatprep.subr.bf16.mxu0 0
        %685 = vmatpush1.bf16.msra.mxu0 %v659
        %686 = vmatprep.subr.bf16.mxu0 0
        %687 = vmatpush1.bf16.msra.mxu0 %v658
        %688 = vmatprep.subr.bf16.mxu0 0
        %689 = vmatpush1.bf16.msra.mxu0 %v657
        %690 = vmatprep.subr.bf16.mxu0 0
        %691 = vmatpush1.bf16.msra.mxu0 %v656
        %692 = vmatprep.subr.bf16.mxu0 0
        %693 = vmatpush1.bf16.msra.mxu0 %v655
        %694 = vmatprep.subr.bf16.mxu0 0
        %695 = vmatpush1.bf16.msra.mxu0 %v654
        %696 = vmatprep.subr.bf16.mxu0 0
        %697 = vmatpush1.bf16.msra.mxu0 %v653
        %698 = vmatprep.subr.bf16.mxu0 0
        %699 = vmatpush1.bf16.msra.mxu0 %v652
        %700 = vmatprep.subr.bf16.mxu0 0
        %701 = vmatpush2.bf16.msra.mxu0 %v667
        %702 = vmatprep.subr.bf16.mxu0 0
        %703 = vmatpush2.bf16.msra.mxu0 %v666
        %704 = vmatprep.subr.bf16.mxu0 0
        %705 = vmatpush2.bf16.msra.mxu0 %v665
        %706 = vmatprep.subr.bf16.mxu0 0
        %707 = vmatpush2.bf16.msra.mxu0 %v664
        %708 = vmatprep.subr.bf16.mxu0 0
        %709 = vmatpush2.bf16.msra.mxu0 %v663
        %710 = vmatprep.subr.bf16.mxu0 0
        %711 = vmatpush2.bf16.msra.mxu0 %v662
        %712 = vmatprep.subr.bf16.mxu0 0
        %713 = vmatpush2.bf16.msra.mxu0 %v661
        %714 = vmatprep.subr.bf16.mxu0 0
        %715 = vmatpush2.bf16.msra.mxu0 %v660
        %716 = vmatprep.mubr.bf16.mxu0 %v541
        %717 = vmatmul.mubr.bf16.gmra.mxu0 %v540
        %v718 = vpop.f32.mrf.mxu0
        %v719 = vadd.f32 0.0, %v718
        %v720 = vpop.f32.mrf.mxu0
        %v721 = vpop.f32.mrf.mxu0
        %v722 = vadd.f32 0.0, %v721
        %v723 = vpop.f32.mrf.mxu0
        %724 = vmatprep.mubr.bf16.mxu0 %v543
        %725 = vmatmul.mubr.bf16.gmra.mxu0 %v542
        %v726 = vpop.f32.mrf.mxu0
        %v727 = vadd.f32 0.0, %v726
        %v728 = vpop.f32.mrf.mxu0
        %v729 = vpop.f32.mrf.mxu0
        %v730 = vadd.f32 0.0, %v729
        %v731 = vpop.f32.mrf.mxu0
        %732 = vdwg.mxu0
        %v733 = vpack.c.bf16 %v722, %v719
        %v734 = vpack.c.bf16 %v730, %v727
        %v735 = vld [vmem:[%s2] sm:$0xff]
        %v736 = vld [vmem:[%s2 + $0x8] sm:$0xff]
        %v737 = vld [vmem:[%s2 + $0x10] sm:$0xff]
        %v738 = vld [vmem:[%s2 + $0x18] sm:$0xff]
        %v739 = vld [vmem:[%s2 + $0x20] sm:$0xff]
        %v740 = vld [vmem:[%s2 + $0x28] sm:$0xff]
        %v741 = vld [vmem:[%s2 + $0x30] sm:$0xff]
        %v742 = vld [vmem:[%s2 + $0x38] sm:$0xff]
        %v751 = vunpack.c.l.b16 %v735
        %v752 = vunpack.c.h.b16 %v735
        %v753 = vunpack.c.l.b16 %v736
        %v754 = vunpack.c.h.b16 %v736
        %v755 = vunpack.c.l.b16 %v737
        %v756 = vunpack.c.h.b16 %v737
        %v757 = vunpack.c.l.b16 %v738
        %v758 = vunpack.c.h.b16 %v738
        %v759 = vunpack.c.l.b16 %v739
        %v760 = vunpack.c.h.b16 %v739
        %v761 = vunpack.c.l.b16 %v740
        %v762 = vunpack.c.h.b16 %v740
        %v763 = vunpack.c.l.b16 %v741
        %v764 = vunpack.c.h.b16 %v741
        %v765 = vunpack.c.l.b16 %v742
        %v766 = vunpack.c.h.b16 %v742
        %v767 = vpack.c.b16 %v753, %v751
        %v768 = vpack.c.b16 %v754, %v752
        %v769 = vpack.c.b16 %v757, %v755
        %v770 = vpack.c.b16 %v758, %v756
        %v771 = vpack.c.b16 %v761, %v759
        %v772 = vpack.c.b16 %v762, %v760
        %v773 = vpack.c.b16 %v765, %v763
        %v774 = vpack.c.b16 %v766, %v764
        %vm783 = vcmask 523264
        %v785 = vsel %vm783, %v733, 0
        %v788 = vsel %vm783, %v734, 0
        %790 = vmatprep.subr.bf16.mxu0 0
        %791 = vmatpush1.bf16.msra.mxu0 0
        %792 = vmatprep.subr.bf16.mxu0 0
        %793 = vmatpush1.bf16.msra.mxu0 0
        %794 = vmatprep.subr.bf16.mxu0 0
        %795 = vmatpush1.bf16.msra.mxu0 0
        %796 = vmatprep.subr.bf16.mxu0 0
        %797 = vmatpush1.bf16.msra.mxu0 0
        %798 = vmatprep.subr.bf16.mxu0 %v774
        %799 = vmatpush1.bf16.msra.mxu0 %v773
        %800 = vmatprep.subr.bf16.mxu0 %v772
        %801 = vmatpush1.bf16.msra.mxu0 %v771
        %802 = vmatprep.subr.bf16.mxu0 %v770
        %803 = vmatpush1.bf16.msra.mxu0 %v769
        %804 = vmatprep.subr.bf16.mxu0 %v768
        %805 = vmatpush1.bf16.msra.mxu0 %v767
        %806 = vmatprep.subr.bf16.mxu0 0
        %807 = vmatpush2.bf16.msra.mxu0 0
        %808 = vmatprep.subr.bf16.mxu0 0
        %809 = vmatpush2.bf16.msra.mxu0 0
        %810 = vmatprep.subr.bf16.mxu0 0
        %811 = vmatpush2.bf16.msra.mxu0 0
        %812 = vmatprep.subr.bf16.mxu0 0
        %813 = vmatpush2.bf16.msra.mxu0 0
        %814 = vmatprep.subr.bf16.mxu0 0
        %815 = vmatpush2.bf16.msra.mxu0 0
        %816 = vmatprep.subr.bf16.mxu0 0
        %817 = vmatpush2.bf16.msra.mxu0 0
        %818 = vmatprep.subr.bf16.mxu0 0
        %819 = vmatpush2.bf16.msra.mxu0 0
        %820 = vmatprep.subr.bf16.mxu0 0
        %821 = vmatpush2.bf16.msra.mxu0 0
        %822 = vmatprep.mubr.bf16.mxu0 0
        %823 = vmatmul.mubr.bf16.gmra.mxu0 %v785
        %v824 = vpop.f32.mrf.mxu0
        %v825 = vadd.f32 0.0, %v824
        %v826 = vpop.f32.mrf.mxu0
        %v827 = vadd.f32 0.0, %v826
        %v828 = vpop.f32.mrf.mxu0
        %v829 = vadd.f32 0.0, %v828
        %v830 = vpop.f32.mrf.mxu0
        %v831 = vadd.f32 0.0, %v830
        %832 = vmatprep.mubr.bf16.mxu0 0
        %833 = vmatmul.mubr.bf16.gmra.mxu0 %v788
        %v834 = vpop.f32.mrf.mxu0
        %v835 = vadd.f32 0.0, %v834
        %v836 = vpop.f32.mrf.mxu0
        %v837 = vadd.f32 0.0, %v836
        %v838 = vpop.f32.mrf.mxu0
        %v839 = vadd.f32 0.0, %v838
        %v840 = vpop.f32.mrf.mxu0
        %v841 = vadd.f32 0.0, %v840
        %842 = vdwg.mxu0
        %v843 = vpack.c.bf16 %v829, %v825
        %v844 = vpack.c.bf16 %v831, %v827
        %v845 = vpack.c.bf16 %v839, %v835
        %v846 = vpack.c.bf16 %v841, %v837
        %v851 = vunpack.c.l.b16 %v843
        %v852 = vunpack.c.l.b16 %v844
        %v853 = vunpack.c.h.b16 %v843
        %v854 = vunpack.c.h.b16 %v844
        %v855 = vunpack.c.l.b16 %v845
        %v856 = vunpack.c.l.b16 %v846
        %v857 = vunpack.c.h.b16 %v845
        %v858 = vunpack.c.h.b16 %v846
        %v859 = vpack.c.b16 %v852, %v851
        %v860 = vpack.c.b16 %v854, %v853
        %v861 = vpack.c.b16 %v856, %v855
        %v862 = vpack.c.b16 %v858, %v857
        %867 = vst [vmem:[#allocation2 + $0x80] sm:$0xff] %v859
        %868 = vst [vmem:[#allocation2 + $0x88] sm:$0xff] %v860
        %869 = vst [vmem:[#allocation2 + $0x90] sm:$0xff] %v861
        %870 = vst [vmem:[#allocation2 + $0x98] sm:$0xff] %v862
        %s871 = scalar_lea.vmem %s1, 128
        %v872 = vld [vmem:[%s871] sm:$0xf]
        %v873 = vld [vmem:[%s871 + $0x4] sm:$0xf]
        %v874 = vld [vmem:[%s871 + $0x8] sm:$0xf]
        %v875 = vld [vmem:[%s871 + $0xc] sm:$0xf]
        %v876 = vld [vmem:[%s871 + $0x10] sm:$0xf]
        %v877 = vld [vmem:[%s871 + $0x14] sm:$0xf]
        %v878 = vld [vmem:[%s871 + $0x18] sm:$0xf]
        %v879 = vld [vmem:[%s871 + $0x1c] sm:$0xf]
        %v880 = vld [vmem:[%s871 + $0x20] sm:$0xf]
        %v881 = vld [vmem:[%s871 + $0x24] sm:$0xf]
        %v882 = vld [vmem:[%s871 + $0x28] sm:$0xf]
        %v883 = vld [vmem:[%s871 + $0x2c] sm:$0xf]
        %v884 = vld [vmem:[%s871 + $0x30] sm:$0xf]
        %v885 = vld [vmem:[%s871 + $0x34] sm:$0xf]
        %v886 = vld [vmem:[%s871 + $0x38] sm:$0xf]
        %v887 = vld [vmem:[%s871 + $0x3c] sm:$0xf]
        %v888 = vld [vmem:[%s871 + $0x40] sm:$0xf]
        %v889 = vld [vmem:[%s871 + $0x44] sm:$0xf]
        %v890 = vld [vmem:[%s871 + $0x48] sm:$0xf]
        %v891 = vld [vmem:[%s871 + $0x4c] sm:$0xf]
        %v892 = vld [vmem:[%s871 + $0x50] sm:$0xf]
        %v893 = vld [vmem:[%s871 + $0x54] sm:$0xf]
        %v894 = vld [vmem:[%s871 + $0x58] sm:$0xf]
        %v895 = vld [vmem:[%s871 + $0x5c] sm:$0xf]
        %v896 = vld [vmem:[%s871 + $0x60] sm:$0xf]
        %v897 = vld [vmem:[%s871 + $0x64] sm:$0xf]
        %v898 = vld [vmem:[%s871 + $0x68] sm:$0xf]
        %v899 = vld [vmem:[%s871 + $0x6c] sm:$0xf]
        %v900 = vld [vmem:[%s871 + $0x70] sm:$0xf]
        %v901 = vld [vmem:[%s871 + $0x74] sm:$0xf]
        %v902 = vld [vmem:[%s871 + $0x78] sm:$0xf]
        %v903 = vld [vmem:[%s871 + $0x7c] sm:$0xf]
        %v936 = vunpack.c.l.b16 %v872
        %v937 = vunpack.c.l.b16 %v873
        %v938 = vunpack.c.l.b16 %v874
        %v939 = vunpack.c.l.b16 %v875
        %v940 = vunpack.c.l.b16 %v876
        %v941 = vunpack.c.l.b16 %v877
        %v942 = vunpack.c.l.b16 %v878
        %v943 = vunpack.c.l.b16 %v879
        %v944 = vunpack.c.l.b16 %v880
        %v945 = vunpack.c.l.b16 %v881
        %v946 = vunpack.c.l.b16 %v882
        %v947 = vunpack.c.l.b16 %v883
        %v948 = vunpack.c.l.b16 %v884
        %v949 = vunpack.c.l.b16 %v885
        %v950 = vunpack.c.l.b16 %v886
        %v951 = vunpack.c.l.b16 %v887
        %v952 = vunpack.c.l.b16 %v888
        %v953 = vunpack.c.l.b16 %v889
        %v954 = vunpack.c.l.b16 %v890
        %v955 = vunpack.c.l.b16 %v891
        %v956 = vunpack.c.l.b16 %v892
        %v957 = vunpack.c.l.b16 %v893
        %v958 = vunpack.c.l.b16 %v894
        %v959 = vunpack.c.l.b16 %v895
        %v960 = vunpack.c.l.b16 %v896
        %v961 = vunpack.c.l.b16 %v897
        %v962 = vunpack.c.l.b16 %v898
        %v963 = vunpack.c.l.b16 %v899
        %v964 = vunpack.c.l.b16 %v900
        %v965 = vunpack.c.l.b16 %v901
        %v966 = vunpack.c.l.b16 %v902
        %v967 = vunpack.c.l.b16 %v903
        %v968 = vpack.c.b16 %v937, %v936
        %v969 = vpack.c.b16 %v939, %v938
        %v970 = vpack.c.b16 %v941, %v940
        %v971 = vpack.c.b16 %v943, %v942
        %v972 = vpack.c.b16 %v945, %v944
        %v973 = vpack.c.b16 %v947, %v946
        %v974 = vpack.c.b16 %v949, %v948
        %v975 = vpack.c.b16 %v951, %v950
        %v976 = vpack.c.b16 %v953, %v952
        %v977 = vpack.c.b16 %v955, %v954
        %v978 = vpack.c.b16 %v957, %v956
        %v979 = vpack.c.b16 %v959, %v958
        %v980 = vpack.c.b16 %v961, %v960
        %v981 = vpack.c.b16 %v963, %v962
        %v982 = vpack.c.b16 %v965, %v964
        %v983 = vpack.c.b16 %v967, %v966
        %1000 = vmatprep.subr.bf16.mxu0 0
        %1001 = vmatpush1.bf16.msra.mxu0 %v975
        %1002 = vmatprep.subr.bf16.mxu0 0
        %1003 = vmatpush1.bf16.msra.mxu0 %v974
        %1004 = vmatprep.subr.bf16.mxu0 0
        %1005 = vmatpush1.bf16.msra.mxu0 %v973
        %1006 = vmatprep.subr.bf16.mxu0 0
        %1007 = vmatpush1.bf16.msra.mxu0 %v972
        %1008 = vmatprep.subr.bf16.mxu0 0
        %1009 = vmatpush1.bf16.msra.mxu0 %v971
        %1010 = vmatprep.subr.bf16.mxu0 0
        %1011 = vmatpush1.bf16.msra.mxu0 %v970
        %1012 = vmatprep.subr.bf16.mxu0 0
        %1013 = vmatpush1.bf16.msra.mxu0 %v969
        %1014 = vmatprep.subr.bf16.mxu0 0
        %1015 = vmatpush1.bf16.msra.mxu0 %v968
        %1016 = vmatprep.subr.bf16.mxu0 0
        %1017 = vmatpush2.bf16.msra.mxu0 %v983
        %1018 = vmatprep.subr.bf16.mxu0 0
        %1019 = vmatpush2.bf16.msra.mxu0 %v982
        %1020 = vmatprep.subr.bf16.mxu0 0
        %1021 = vmatpush2.bf16.msra.mxu0 %v981
        %1022 = vmatprep.subr.bf16.mxu0 0
        %1023 = vmatpush2.bf16.msra.mxu0 %v980
        %1024 = vmatprep.subr.bf16.mxu0 0
        %1025 = vmatpush2.bf16.msra.mxu0 %v979
        %1026 = vmatprep.subr.bf16.mxu0 0
        %1027 = vmatpush2.bf16.msra.mxu0 %v978
        %1028 = vmatprep.subr.bf16.mxu0 0
        %1029 = vmatpush2.bf16.msra.mxu0 %v977
        %1030 = vmatprep.subr.bf16.mxu0 0
        %1031 = vmatpush2.bf16.msra.mxu0 %v976
        %1032 = vmatprep.mubr.bf16.mxu0 %v545
        %1033 = vmatmul.mubr.bf16.gmra.mxu0 %v544
        %v1034 = vpop.f32.mrf.mxu0
        %v1035 = vadd.f32 0.0, %v1034
        %v1036 = vpop.f32.mrf.mxu0
        %v1037 = vpop.f32.mrf.mxu0
        %v1038 = vadd.f32 0.0, %v1037
        %v1039 = vpop.f32.mrf.mxu0
        %1040 = vmatprep.mubr.bf16.mxu0 %v547
        %1041 = vmatmul.mubr.bf16.gmra.mxu0 %v546
        %v1042 = vpop.f32.mrf.mxu0
        %v1043 = vadd.f32 0.0, %v1042
        %v1044 = vpop.f32.mrf.mxu0
        %v1045 = vpop.f32.mrf.mxu0
        %v1046 = vadd.f32 0.0, %v1045
        %v1047 = vpop.f32.mrf.mxu0
        %1048 = vdwg.mxu0
        %v1049 = vpack.c.bf16 %v1038, %v1035
        %v1050 = vpack.c.bf16 %v1046, %v1043
        %s1051 = scalar_lea.vmem %s2, 64
        %v1052 = vld [vmem:[%s1051] sm:$0xff]
        %v1053 = vld [vmem:[%s1051 + $0x8] sm:$0xff]
        %v1054 = vld [vmem:[%s1051 + $0x10] sm:$0xff]
        %v1055 = vld [vmem:[%s1051 + $0x18] sm:$0xff]
        %v1056 = vld [vmem:[%s1051 + $0x20] sm:$0xff]
        %v1057 = vld [vmem:[%s1051 + $0x28] sm:$0xff]
        %v1058 = vld [vmem:[%s1051 + $0x30] sm:$0xff]
        %v1059 = vld [vmem:[%s1051 + $0x38] sm:$0xff]
        %v1068 = vunpack.c.l.b16 %v1052
        %v1069 = vunpack.c.h.b16 %v1052
        %v1070 = vunpack.c.l.b16 %v1053
        %v1071 = vunpack.c.h.b16 %v1053
        %v1072 = vunpack.c.l.b16 %v1054
        %v1073 = vunpack.c.h.b16 %v1054
        %v1074 = vunpack.c.l.b16 %v1055
        %v1075 = vunpack.c.h.b16 %v1055
        %v1076 = vunpack.c.l.b16 %v1056
        %v1077 = vunpack.c.h.b16 %v1056
        %v1078 = vunpack.c.l.b16 %v1057
        %v1079 = vunpack.c.h.b16 %v1057
        %v1080 = vunpack.c.l.b16 %v1058
        %v1081 = vunpack.c.h.b16 %v1058
        %v1082 = vunpack.c.l.b16 %v1059
        %v1083 = vunpack.c.h.b16 %v1059
        %v1084 = vpack.c.b16 %v1070, %v1068
        %v1085 = vpack.c.b16 %v1071, %v1069
        %v1086 = vpack.c.b16 %v1074, %v1072
        %v1087 = vpack.c.b16 %v1075, %v1073
        %v1088 = vpack.c.b16 %v1078, %v1076
        %v1089 = vpack.c.b16 %v1079, %v1077
        %v1090 = vpack.c.b16 %v1082, %v1080
        %v1091 = vpack.c.b16 %v1083, %v1081
        %v1101 = vsel %vm783, %v1049, 0
        %v1104 = vsel %vm783, %v1050, 0
        %1106 = vmatprep.subr.bf16.mxu0 0
        %1107 = vmatpush1.bf16.msra.mxu0 0
        %1108 = vmatprep.subr.bf16.mxu0 0
        %1109 = vmatpush1.bf16.msra.mxu0 0
        %1110 = vmatprep.subr.bf16.mxu0 0
        %1111 = vmatpush1.bf16.msra.mxu0 0
        %1112 = vmatprep.subr.bf16.mxu0 0
        %1113 = vmatpush1.bf16.msra.mxu0 0
        %1114 = vmatprep.subr.bf16.mxu0 %v1091
        %1115 = vmatpush1.bf16.msra.mxu0 %v1090
        %1116 = vmatprep.subr.bf16.mxu0 %v1089
        %1117 = vmatpush1.bf16.msra.mxu0 %v1088
        %1118 = vmatprep.subr.bf16.mxu0 %v1087
        %1119 = vmatpush1.bf16.msra.mxu0 %v1086
        %1120 = vmatprep.subr.bf16.mxu0 %v1085
        %1121 = vmatpush1.bf16.msra.mxu0 %v1084
        %1122 = vmatprep.subr.bf16.mxu0 0
        %1123 = vmatpush2.bf16.msra.mxu0 0
        %1124 = vmatprep.subr.bf16.mxu0 0
        %1125 = vmatpush2.bf16.msra.mxu0 0
        %1126 = vmatprep.subr.bf16.mxu0 0
        %1127 = vmatpush2.bf16.msra.mxu0 0
        %1128 = vmatprep.subr.bf16.mxu0 0
        %1129 = vmatpush2.bf16.msra.mxu0 0
        %1130 = vmatprep.subr.bf16.mxu0 0
        %1131 = vmatpush2.bf16.msra.mxu0 0
        %1132 = vmatprep.subr.bf16.mxu0 0
        %1133 = vmatpush2.bf16.msra.mxu0 0
        %1134 = vmatprep.subr.bf16.mxu0 0
        %1135 = vmatpush2.bf16.msra.mxu0 0
        %1136 = vmatprep.subr.bf16.mxu0 0
        %1137 = vmatpush2.bf16.msra.mxu0 0
        %1138 = vmatprep.mubr.bf16.mxu0 0
        %1139 = vmatmul.mubr.bf16.gmra.mxu0 %v1101
        %v1140 = vpop.f32.mrf.mxu0
        %v1141 = vadd.f32 0.0, %v1140
        %v1142 = vpop.f32.mrf.mxu0
        %v1143 = vadd.f32 0.0, %v1142
        %v1144 = vpop.f32.mrf.mxu0
        %v1145 = vadd.f32 0.0, %v1144
        %v1146 = vpop.f32.mrf.mxu0
        %v1147 = vadd.f32 0.0, %v1146
        %1148 = vmatprep.mubr.bf16.mxu0 0
        %1149 = vmatmul.mubr.bf16.gmra.mxu0 %v1104
        %v1150 = vpop.f32.mrf.mxu0
        %v1151 = vadd.f32 0.0, %v1150
        %v1152 = vpop.f32.mrf.mxu0
        %v1153 = vadd.f32 0.0, %v1152
        %v1154 = vpop.f32.mrf.mxu0
        %v1155 = vadd.f32 0.0, %v1154
        %v1156 = vpop.f32.mrf.mxu0
        %v1157 = vadd.f32 0.0, %v1156
        %1158 = vdwg.mxu0
        %v1159 = vpack.c.bf16 %v1145, %v1141
        %v1160 = vpack.c.bf16 %v1147, %v1143
        %v1161 = vpack.c.bf16 %v1155, %v1151
        %v1162 = vpack.c.bf16 %v1157, %v1153
        %v1167 = vunpack.c.l.b16 %v1159
        %v1168 = vunpack.c.l.b16 %v1160
        %v1169 = vunpack.c.h.b16 %v1159
        %v1170 = vunpack.c.h.b16 %v1160
        %v1171 = vunpack.c.l.b16 %v1161
        %v1172 = vunpack.c.l.b16 %v1162
        %v1173 = vunpack.c.h.b16 %v1161
        %v1174 = vunpack.c.h.b16 %v1162
        %v1175 = vpack.c.b16 %v1168, %v1167
        %v1176 = vpack.c.b16 %v1170, %v1169
        %v1177 = vpack.c.b16 %v1172, %v1171
        %v1178 = vpack.c.b16 %v1174, %v1173
        %1183 = vst [vmem:[#allocation2 + $0xa0] sm:$0xff] %v1175
        %1184 = vst [vmem:[#allocation2 + $0xa8] sm:$0xff] %v1176
        %1185 = vst [vmem:[#allocation2 + $0xb0] sm:$0xff] %v1177
        %1186 = vst [vmem:[#allocation2 + $0xb8] sm:$0xff] %v1178
        %s1187 = scalar_lea.vmem %s1, 256
        %v1188 = vld [vmem:[%s1187] sm:$0xf]
        %v1189 = vld [vmem:[%s1187 + $0x4] sm:$0xf]
        %v1190 = vld [vmem:[%s1187 + $0x8] sm:$0xf]
        %v1191 = vld [vmem:[%s1187 + $0xc] sm:$0xf]
        %v1192 = vld [vmem:[%s1187 + $0x10] sm:$0xf]
        %v1193 = vld [vmem:[%s1187 + $0x14] sm:$0xf]
        %v1194 = vld [vmem:[%s1187 + $0x18] sm:$0xf]
        %v1195 = vld [vmem:[%s1187 + $0x1c] sm:$0xf]
        %v1196 = vld [vmem:[%s1187 + $0x20] sm:$0xf]
        %v1197 = vld [vmem:[%s1187 + $0x24] sm:$0xf]
        %v1198 = vld [vmem:[%s1187 + $0x28] sm:$0xf]
        %v1199 = vld [vmem:[%s1187 + $0x2c] sm:$0xf]
        %v1200 = vld [vmem:[%s1187 + $0x30] sm:$0xf]
        %v1201 = vld [vmem:[%s1187 + $0x34] sm:$0xf]
        %v1202 = vld [vmem:[%s1187 + $0x38] sm:$0xf]
        %v1203 = vld [vmem:[%s1187 + $0x3c] sm:$0xf]
        %v1204 = vld [vmem:[%s1187 + $0x40] sm:$0xf]
        %v1205 = vld [vmem:[%s1187 + $0x44] sm:$0xf]
        %v1206 = vld [vmem:[%s1187 + $0x48] sm:$0xf]
        %v1207 = vld [vmem:[%s1187 + $0x4c] sm:$0xf]
        %v1208 = vld [vmem:[%s1187 + $0x50] sm:$0xf]
        %v1209 = vld [vmem:[%s1187 + $0x54] sm:$0xf]
        %v1210 = vld [vmem:[%s1187 + $0x58] sm:$0xf]
        %v1211 = vld [vmem:[%s1187 + $0x5c] sm:$0xf]
        %v1212 = vld [vmem:[%s1187 + $0x60] sm:$0xf]
        %v1213 = vld [vmem:[%s1187 + $0x64] sm:$0xf]
        %v1214 = vld [vmem:[%s1187 + $0x68] sm:$0xf]
        %v1215 = vld [vmem:[%s1187 + $0x6c] sm:$0xf]
        %v1216 = vld [vmem:[%s1187 + $0x70] sm:$0xf]
        %v1217 = vld [vmem:[%s1187 + $0x74] sm:$0xf]
        %v1218 = vld [vmem:[%s1187 + $0x78] sm:$0xf]
        %v1219 = vld [vmem:[%s1187 + $0x7c] sm:$0xf]
        %v1252 = vunpack.c.l.b16 %v1188
        %v1253 = vunpack.c.l.b16 %v1189
        %v1254 = vunpack.c.l.b16 %v1190
        %v1255 = vunpack.c.l.b16 %v1191
        %v1256 = vunpack.c.l.b16 %v1192
        %v1257 = vunpack.c.l.b16 %v1193
        %v1258 = vunpack.c.l.b16 %v1194
        %v1259 = vunpack.c.l.b16 %v1195
        %v1260 = vunpack.c.l.b16 %v1196
        %v1261 = vunpack.c.l.b16 %v1197
        %v1262 = vunpack.c.l.b16 %v1198
        %v1263 = vunpack.c.l.b16 %v1199
        %v1264 = vunpack.c.l.b16 %v1200
        %v1265 = vunpack.c.l.b16 %v1201
        %v1266 = vunpack.c.l.b16 %v1202
        %v1267 = vunpack.c.l.b16 %v1203
        %v1268 = vunpack.c.l.b16 %v1204
        %v1269 = vunpack.c.l.b16 %v1205
        %v1270 = vunpack.c.l.b16 %v1206
        %v1271 = vunpack.c.l.b16 %v1207
        %v1272 = vunpack.c.l.b16 %v1208
        %v1273 = vunpack.c.l.b16 %v1209
        %v1274 = vunpack.c.l.b16 %v1210
        %v1275 = vunpack.c.l.b16 %v1211
        %v1276 = vunpack.c.l.b16 %v1212
        %v1277 = vunpack.c.l.b16 %v1213
        %v1278 = vunpack.c.l.b16 %v1214
        %v1279 = vunpack.c.l.b16 %v1215
        %v1280 = vunpack.c.l.b16 %v1216
        %v1281 = vunpack.c.l.b16 %v1217
        %v1282 = vunpack.c.l.b16 %v1218
        %v1283 = vunpack.c.l.b16 %v1219
        %v1284 = vpack.c.b16 %v1253, %v1252
        %v1285 = vpack.c.b16 %v1255, %v1254
        %v1286 = vpack.c.b16 %v1257, %v1256
        %v1287 = vpack.c.b16 %v1259, %v1258
        %v1288 = vpack.c.b16 %v1261, %v1260
        %v1289 = vpack.c.b16 %v1263, %v1262
        %v1290 = vpack.c.b16 %v1265, %v1264
        %v1291 = vpack.c.b16 %v1267, %v1266
        %v1292 = vpack.c.b16 %v1269, %v1268
        %v1293 = vpack.c.b16 %v1271, %v1270
        %v1294 = vpack.c.b16 %v1273, %v1272
        %v1295 = vpack.c.b16 %v1275, %v1274
        %v1296 = vpack.c.b16 %v1277, %v1276
        %v1297 = vpack.c.b16 %v1279, %v1278
        %v1298 = vpack.c.b16 %v1281, %v1280
        %v1299 = vpack.c.b16 %v1283, %v1282
        %1316 = vmatprep.subr.bf16.mxu0 0
        %1317 = vmatpush1.bf16.msra.mxu0 %v1291
        %1318 = vmatprep.subr.bf16.mxu0 0
        %1319 = vmatpush1.bf16.msra.mxu0 %v1290
        %1320 = vmatprep.subr.bf16.mxu0 0
        %1321 = vmatpush1.bf16.msra.mxu0 %v1289
        %1322 = vmatprep.subr.bf16.mxu0 0
        %1323 = vmatpush1.bf16.msra.mxu0 %v1288
        %1324 = vmatprep.subr.bf16.mxu0 0
        %1325 = vmatpush1.bf16.msra.mxu0 %v1287
        %1326 = vmatprep.subr.bf16.mxu0 0
        %1327 = vmatpush1.bf16.msra.mxu0 %v1286
        %1328 = vmatprep.subr.bf16.mxu0 0
        %1329 = vmatpush1.bf16.msra.mxu0 %v1285
        %1330 = vmatprep.subr.bf16.mxu0 0
        %1331 = vmatpush1.bf16.msra.mxu0 %v1284
        %1332 = vmatprep.subr.bf16.mxu0 0
        %1333 = vmatpush2.bf16.msra.mxu0 %v1299
        %1334 = vmatprep.subr.bf16.mxu0 0
        %1335 = vmatpush2.bf16.msra.mxu0 %v1298
        %1336 = vmatprep.subr.bf16.mxu0 0
        %1337 = vmatpush2.bf16.msra.mxu0 %v1297
        %1338 = vmatprep.subr.bf16.mxu0 0
        %1339 = vmatpush2.bf16.msra.mxu0 %v1296
        %1340 = vmatprep.subr.bf16.mxu0 0
        %1341 = vmatpush2.bf16.msra.mxu0 %v1295
        %1342 = vmatprep.subr.bf16.mxu0 0
        %1343 = vmatpush2.bf16.msra.mxu0 %v1294
        %1344 = vmatprep.subr.bf16.mxu0 0
        %1345 = vmatpush2.bf16.msra.mxu0 %v1293
        %1346 = vmatprep.subr.bf16.mxu0 0
        %1347 = vmatpush2.bf16.msra.mxu0 %v1292
        %1348 = vmatprep.mubr.bf16.mxu0 %v549
        %1349 = vmatmul.mubr.bf16.gmra.mxu0 %v548
        %v1350 = vpop.f32.mrf.mxu0
        %v1351 = vadd.f32 0.0, %v1350
        %v1352 = vpop.f32.mrf.mxu0
        %v1353 = vpop.f32.mrf.mxu0
        %v1354 = vadd.f32 0.0, %v1353
        %v1355 = vpop.f32.mrf.mxu0
        %1356 = vmatprep.mubr.bf16.mxu0 %v551
        %1357 = vmatmul.mubr.bf16.gmra.mxu0 %v550
        %v1358 = vpop.f32.mrf.mxu0
        %v1359 = vadd.f32 0.0, %v1358
        %v1360 = vpop.f32.mrf.mxu0
        %v1361 = vpop.f32.mrf.mxu0
        %v1362 = vadd.f32 0.0, %v1361
        %v1363 = vpop.f32.mrf.mxu0
        %1364 = vdwg.mxu0
        %v1365 = vpack.c.bf16 %v1354, %v1351
        %v1366 = vpack.c.bf16 %v1362, %v1359
        %s1367 = scalar_lea.vmem %s2, 128
        %v1368 = vld [vmem:[%s1367] sm:$0xff]
        %v1369 = vld [vmem:[%s1367 + $0x8] sm:$0xff]
        %v1370 = vld [vmem:[%s1367 + $0x10] sm:$0xff]
        %v1371 = vld [vmem:[%s1367 + $0x18] sm:$0xff]
        %v1372 = vld [vmem:[%s1367 + $0x20] sm:$0xff]
        %v1373 = vld [vmem:[%s1367 + $0x28] sm:$0xff]
        %v1374 = vld [vmem:[%s1367 + $0x30] sm:$0xff]
        %v1375 = vld [vmem:[%s1367 + $0x38] sm:$0xff]
        %v1384 = vunpack.c.l.b16 %v1368
        %v1385 = vunpack.c.h.b16 %v1368
        %v1386 = vunpack.c.l.b16 %v1369
        %v1387 = vunpack.c.h.b16 %v1369
        %v1388 = vunpack.c.l.b16 %v1370
        %v1389 = vunpack.c.h.b16 %v1370
        %v1390 = vunpack.c.l.b16 %v1371
        %v1391 = vunpack.c.h.b16 %v1371
        %v1392 = vunpack.c.l.b16 %v1372
        %v1393 = vunpack.c.h.b16 %v1372
        %v1394 = vunpack.c.l.b16 %v1373
        %v1395 = vunpack.c.h.b16 %v1373
        %v1396 = vunpack.c.l.b16 %v1374
        %v1397 = vunpack.c.h.b16 %v1374
        %v1398 = vunpack.c.l.b16 %v1375
        %v1399 = vunpack.c.h.b16 %v1375
        %v1400 = vpack.c.b16 %v1386, %v1384
        %v1401 = vpack.c.b16 %v1387, %v1385
        %v1402 = vpack.c.b16 %v1390, %v1388
        %v1403 = vpack.c.b16 %v1391, %v1389
        %v1404 = vpack.c.b16 %v1394, %v1392
        %v1405 = vpack.c.b16 %v1395, %v1393
        %v1406 = vpack.c.b16 %v1398, %v1396
        %v1407 = vpack.c.b16 %v1399, %v1397
        %v1417 = vsel %vm783, %v1365, 0
        %v1420 = vsel %vm783, %v1366, 0
        %1422 = vmatprep.subr.bf16.mxu0 0
        %1423 = vmatpush1.bf16.msra.mxu0 0
        %1424 = vmatprep.subr.bf16.mxu0 0
        %1425 = vmatpush1.bf16.msra.mxu0 0
        %1426 = vmatprep.subr.bf16.mxu0 0
        %1427 = vmatpush1.bf16.msra.mxu0 0
        %1428 = vmatprep.subr.bf16.mxu0 0
        %1429 = vmatpush1.bf16.msra.mxu0 0
        %1430 = vmatprep.subr.bf16.mxu0 %v1407
        %1431 = vmatpush1.bf16.msra.mxu0 %v1406
        %1432 = vmatprep.subr.bf16.mxu0 %v1405
        %1433 = vmatpush1.bf16.msra.mxu0 %v1404
        %1434 = vmatprep.subr.bf16.mxu0 %v1403
        %1435 = vmatpush1.bf16.msra.mxu0 %v1402
        %1436 = vmatprep.subr.bf16.mxu0 %v1401
        %1437 = vmatpush1.bf16.msra.mxu0 %v1400
        %1438 = vmatprep.subr.bf16.mxu0 0
        %1439 = vmatpush2.bf16.msra.mxu0 0
        %1440 = vmatprep.subr.bf16.mxu0 0
        %1441 = vmatpush2.bf16.msra.mxu0 0
        %1442 = vmatprep.subr.bf16.mxu0 0
        %1443 = vmatpush2.bf16.msra.mxu0 0
        %1444 = vmatprep.subr.bf16.mxu0 0
        %1445 = vmatpush2.bf16.msra.mxu0 0
        %1446 = vmatprep.subr.bf16.mxu0 0
        %1447 = vmatpush2.bf16.msra.mxu0 0
        %1448 = vmatprep.subr.bf16.mxu0 0
        %1449 = vmatpush2.bf16.msra.mxu0 0
        %1450 = vmatprep.subr.bf16.mxu0 0
        %1451 = vmatpush2.bf16.msra.mxu0 0
        %1452 = vmatprep.subr.bf16.mxu0 0
        %1453 = vmatpush2.bf16.msra.mxu0 0
        %1454 = vmatprep.mubr.bf16.mxu0 0
        %1455 = vmatmul.mubr.bf16.gmra.mxu0 %v1417
        %v1456 = vpop.f32.mrf.mxu0
        %v1457 = vadd.f32 0.0, %v1456
        %v1458 = vpop.f32.mrf.mxu0
        %v1459 = vadd.f32 0.0, %v1458
        %v1460 = vpop.f32.mrf.mxu0
        %v1461 = vadd.f32 0.0, %v1460
        %v1462 = vpop.f32.mrf.mxu0
        %v1463 = vadd.f32 0.0, %v1462
        %1464 = vmatprep.mubr.bf16.mxu0 0
        %1465 = vmatmul.mubr.bf16.gmra.mxu0 %v1420
        %v1466 = vpop.f32.mrf.mxu0
        %v1467 = vadd.f32 0.0, %v1466
        %v1468 = vpop.f32.mrf.mxu0
        %v1469 = vadd.f32 0.0, %v1468
        %v1470 = vpop.f32.mrf.mxu0
        %v1471 = vadd.f32 0.0, %v1470
        %v1472 = vpop.f32.mrf.mxu0
        %v1473 = vadd.f32 0.0, %v1472
        %1474 = vdwg.mxu0
        %v1475 = vpack.c.bf16 %v1461, %v1457
        %v1476 = vpack.c.bf16 %v1463, %v1459
        %v1477 = vpack.c.bf16 %v1471, %v1467
        %v1478 = vpack.c.bf16 %v1473, %v1469
        %v1483 = vunpack.c.l.b16 %v1475
        %v1484 = vunpack.c.l.b16 %v1476
        %v1485 = vunpack.c.h.b16 %v1475
        %v1486 = vunpack.c.h.b16 %v1476
        %v1487 = vunpack.c.l.b16 %v1477
        %v1488 = vunpack.c.l.b16 %v1478
        %v1489 = vunpack.c.h.b16 %v1477
        %v1490 = vunpack.c.h.b16 %v1478
        %v1491 = vpack.c.b16 %v1484, %v1483
        %v1492 = vpack.c.b16 %v1486, %v1485
        %v1493 = vpack.c.b16 %v1488, %v1487
        %v1494 = vpack.c.b16 %v1490, %v1489
        %1499 = vst [vmem:[#allocation2 + $0xc0] sm:$0xff] %v1491
        %1500 = vst [vmem:[#allocation2 + $0xc8] sm:$0xff] %v1492
        %1501 = vst [vmem:[#allocation2 + $0xd0] sm:$0xff] %v1493
        %1502 = vst [vmem:[#allocation2 + $0xd8] sm:$0xff] %v1494
        %s1503 = scalar_lea.vmem %s1, 384
        %v1504 = vld [vmem:[%s1503] sm:$0xf]
        %v1505 = vld [vmem:[%s1503 + $0x4] sm:$0xf]
        %v1506 = vld [vmem:[%s1503 + $0x8] sm:$0xf]
        %v1507 = vld [vmem:[%s1503 + $0xc] sm:$0xf]
        %v1508 = vld [vmem:[%s1503 + $0x10] sm:$0xf]
        %v1509 = vld [vmem:[%s1503 + $0x14] sm:$0xf]
        %v1510 = vld [vmem:[%s1503 + $0x18] sm:$0xf]
        %v1511 = vld [vmem:[%s1503 + $0x1c] sm:$0xf]
        %v1512 = vld [vmem:[%s1503 + $0x20] sm:$0xf]
        %v1513 = vld [vmem:[%s1503 + $0x24] sm:$0xf]
        %v1514 = vld [vmem:[%s1503 + $0x28] sm:$0xf]
        %v1515 = vld [vmem:[%s1503 + $0x2c] sm:$0xf]
        %v1516 = vld [vmem:[%s1503 + $0x30] sm:$0xf]
        %v1517 = vld [vmem:[%s1503 + $0x34] sm:$0xf]
        %v1518 = vld [vmem:[%s1503 + $0x38] sm:$0xf]
        %v1519 = vld [vmem:[%s1503 + $0x3c] sm:$0xf]
        %v1520 = vld [vmem:[%s1503 + $0x40] sm:$0xf]
        %v1521 = vld [vmem:[%s1503 + $0x44] sm:$0xf]
        %v1522 = vld [vmem:[%s1503 + $0x48] sm:$0xf]
        %v1523 = vld [vmem:[%s1503 + $0x4c] sm:$0xf]
        %v1524 = vld [vmem:[%s1503 + $0x50] sm:$0xf]
        %v1525 = vld [vmem:[%s1503 + $0x54] sm:$0xf]
        %v1526 = vld [vmem:[%s1503 + $0x58] sm:$0xf]
        %v1527 = vld [vmem:[%s1503 + $0x5c] sm:$0xf]
        %v1528 = vld [vmem:[%s1503 + $0x60] sm:$0xf]
        %v1529 = vld [vmem:[%s1503 + $0x64] sm:$0xf]
        %v1530 = vld [vmem:[%s1503 + $0x68] sm:$0xf]
        %v1531 = vld [vmem:[%s1503 + $0x6c] sm:$0xf]
        %v1532 = vld [vmem:[%s1503 + $0x70] sm:$0xf]
        %v1533 = vld [vmem:[%s1503 + $0x74] sm:$0xf]
        %v1534 = vld [vmem:[%s1503 + $0x78] sm:$0xf]
        %v1535 = vld [vmem:[%s1503 + $0x7c] sm:$0xf]
        %v1568 = vunpack.c.l.b16 %v1504
        %v1569 = vunpack.c.l.b16 %v1505
        %v1570 = vunpack.c.l.b16 %v1506
        %v1571 = vunpack.c.l.b16 %v1507
        %v1572 = vunpack.c.l.b16 %v1508
        %v1573 = vunpack.c.l.b16 %v1509
        %v1574 = vunpack.c.l.b16 %v1510
        %v1575 = vunpack.c.l.b16 %v1511
        %v1576 = vunpack.c.l.b16 %v1512
        %v1577 = vunpack.c.l.b16 %v1513
        %v1578 = vunpack.c.l.b16 %v1514
        %v1579 = vunpack.c.l.b16 %v1515
        %v1580 = vunpack.c.l.b16 %v1516
        %v1581 = vunpack.c.l.b16 %v1517
        %v1582 = vunpack.c.l.b16 %v1518
        %v1583 = vunpack.c.l.b16 %v1519
        %v1584 = vunpack.c.l.b16 %v1520
        %v1585 = vunpack.c.l.b16 %v1521
        %v1586 = vunpack.c.l.b16 %v1522
        %v1587 = vunpack.c.l.b16 %v1523
        %v1588 = vunpack.c.l.b16 %v1524
        %v1589 = vunpack.c.l.b16 %v1525
        %v1590 = vunpack.c.l.b16 %v1526
        %v1591 = vunpack.c.l.b16 %v1527
        %v1592 = vunpack.c.l.b16 %v1528
        %v1593 = vunpack.c.l.b16 %v1529
        %v1594 = vunpack.c.l.b16 %v1530
        %v1595 = vunpack.c.l.b16 %v1531
        %v1596 = vunpack.c.l.b16 %v1532
        %v1597 = vunpack.c.l.b16 %v1533
        %v1598 = vunpack.c.l.b16 %v1534
        %v1599 = vunpack.c.l.b16 %v1535
        %v1600 = vpack.c.b16 %v1569, %v1568
        %v1601 = vpack.c.b16 %v1571, %v1570
        %v1602 = vpack.c.b16 %v1573, %v1572
        %v1603 = vpack.c.b16 %v1575, %v1574
        %v1604 = vpack.c.b16 %v1577, %v1576
        %v1605 = vpack.c.b16 %v1579, %v1578
        %v1606 = vpack.c.b16 %v1581, %v1580
        %v1607 = vpack.c.b16 %v1583, %v1582
        %v1608 = vpack.c.b16 %v1585, %v1584
        %v1609 = vpack.c.b16 %v1587, %v1586
        %v1610 = vpack.c.b16 %v1589, %v1588
        %v1611 = vpack.c.b16 %v1591, %v1590
        %v1612 = vpack.c.b16 %v1593, %v1592
        %v1613 = vpack.c.b16 %v1595, %v1594
        %v1614 = vpack.c.b16 %v1597, %v1596
        %v1615 = vpack.c.b16 %v1599, %v1598
        %1632 = vmatprep.subr.bf16.mxu0 0
        %1633 = vmatpush1.bf16.msra.mxu0 %v1607
        %1634 = vmatprep.subr.bf16.mxu0 0
        %1635 = vmatpush1.bf16.msra.mxu0 %v1606
        %1636 = vmatprep.subr.bf16.mxu0 0
        %1637 = vmatpush1.bf16.msra.mxu0 %v1605
        %1638 = vmatprep.subr.bf16.mxu0 0
        %1639 = vmatpush1.bf16.msra.mxu0 %v1604
        %1640 = vmatprep.subr.bf16.mxu0 0
        %1641 = vmatpush1.bf16.msra.mxu0 %v1603
        %1642 = vmatprep.subr.bf16.mxu0 0
        %1643 = vmatpush1.bf16.msra.mxu0 %v1602
        %1644 = vmatprep.subr.bf16.mxu0 0
        %1645 = vmatpush1.bf16.msra.mxu0 %v1601
        %1646 = vmatprep.subr.bf16.mxu0 0
        %1647 = vmatpush1.bf16.msra.mxu0 %v1600
        %1648 = vmatprep.subr.bf16.mxu0 0
        %1649 = vmatpush2.bf16.msra.mxu0 %v1615
        %1650 = vmatprep.subr.bf16.mxu0 0
        %1651 = vmatpush2.bf16.msra.mxu0 %v1614
        %1652 = vmatprep.subr.bf16.mxu0 0
        %1653 = vmatpush2.bf16.msra.mxu0 %v1613
        %1654 = vmatprep.subr.bf16.mxu0 0
        %1655 = vmatpush2.bf16.msra.mxu0 %v1612
        %1656 = vmatprep.subr.bf16.mxu0 0
        %1657 = vmatpush2.bf16.msra.mxu0 %v1611
        %1658 = vmatprep.subr.bf16.mxu0 0
        %1659 = vmatpush2.bf16.msra.mxu0 %v1610
        %1660 = vmatprep.subr.bf16.mxu0 0
        %1661 = vmatpush2.bf16.msra.mxu0 %v1609
        %1662 = vmatprep.subr.bf16.mxu0 0
        %1663 = vmatpush2.bf16.msra.mxu0 %v1608
        %1664 = vmatprep.mubr.bf16.mxu0 %v553
        %1665 = vmatmul.mubr.bf16.gmra.mxu0 %v552
        %v1666 = vpop.f32.mrf.mxu0
        %v1667 = vadd.f32 0.0, %v1666
        %v1668 = vpop.f32.mrf.mxu0
        %v1669 = vpop.f32.mrf.mxu0
        %v1670 = vadd.f32 0.0, %v1669
        %v1671 = vpop.f32.mrf.mxu0
        %1672 = vmatprep.mubr.bf16.mxu0 %v555
        %1673 = vmatmul.mubr.bf16.gmra.mxu0 %v554
        %v1674 = vpop.f32.mrf.mxu0
        %v1675 = vadd.f32 0.0, %v1674
        %v1676 = vpop.f32.mrf.mxu0
        %v1677 = vpop.f32.mrf.mxu0
        %v1678 = vadd.f32 0.0, %v1677
        %v1679 = vpop.f32.mrf.mxu0
        %1680 = vdwg.mxu0
        %v1681 = vpack.c.bf16 %v1670, %v1667
        %v1682 = vpack.c.bf16 %v1678, %v1675
        %s1683 = scalar_lea.vmem %s2, 192
        %v1684 = vld [vmem:[%s1683] sm:$0xff]
        %v1685 = vld [vmem:[%s1683 + $0x8] sm:$0xff]
        %v1686 = vld [vmem:[%s1683 + $0x10] sm:$0xff]
        %v1687 = vld [vmem:[%s1683 + $0x18] sm:$0xff]
        %v1688 = vld [vmem:[%s1683 + $0x20] sm:$0xff]
        %v1689 = vld [vmem:[%s1683 + $0x28] sm:$0xff]
        %v1690 = vld [vmem:[%s1683 + $0x30] sm:$0xff]
        %v1691 = vld [vmem:[%s1683 + $0x38] sm:$0xff]
        %v1700 = vunpack.c.l.b16 %v1684
        %v1701 = vunpack.c.h.b16 %v1684
        %v1702 = vunpack.c.l.b16 %v1685
        %v1703 = vunpack.c.h.b16 %v1685
        %v1704 = vunpack.c.l.b16 %v1686
        %v1705 = vunpack.c.h.b16 %v1686
        %v1706 = vunpack.c.l.b16 %v1687
        %v1707 = vunpack.c.h.b16 %v1687
        %v1708 = vunpack.c.l.b16 %v1688
        %v1709 = vunpack.c.h.b16 %v1688
        %v1710 = vunpack.c.l.b16 %v1689
        %v1711 = vunpack.c.h.b16 %v1689
        %v1712 = vunpack.c.l.b16 %v1690
        %v1713 = vunpack.c.h.b16 %v1690
        %v1714 = vunpack.c.l.b16 %v1691
        %v1715 = vunpack.c.h.b16 %v1691
        %v1716 = vpack.c.b16 %v1702, %v1700
        %v1717 = vpack.c.b16 %v1703, %v1701
        %v1718 = vpack.c.b16 %v1706, %v1704
        %v1719 = vpack.c.b16 %v1707, %v1705
        %v1720 = vpack.c.b16 %v1710, %v1708
        %v1721 = vpack.c.b16 %v1711, %v1709
        %v1722 = vpack.c.b16 %v1714, %v1712
        %v1723 = vpack.c.b16 %v1715, %v1713
        %v1733 = vsel %vm783, %v1681, 0
        %v1736 = vsel %vm783, %v1682, 0
        %1738 = vmatprep.subr.bf16.mxu0 0
        %1739 = vmatpush1.bf16.msra.mxu0 0
        %1740 = vmatprep.subr.bf16.mxu0 0
        %1741 = vmatpush1.bf16.msra.mxu0 0
        %1742 = vmatprep.subr.bf16.mxu0 0
        %1743 = vmatpush1.bf16.msra.mxu0 0
        %1744 = vmatprep.subr.bf16.mxu0 0
        %1745 = vmatpush1.bf16.msra.mxu0 0
        %1746 = vmatprep.subr.bf16.mxu0 %v1723
        %1747 = vmatpush1.bf16.msra.mxu0 %v1722
        %1748 = vmatprep.subr.bf16.mxu0 %v1721
        %1749 = vmatpush1.bf16.msra.mxu0 %v1720
        %1750 = vmatprep.subr.bf16.mxu0 %v1719
        %1751 = vmatpush1.bf16.msra.mxu0 %v1718
        %1752 = vmatprep.subr.bf16.mxu0 %v1717
        %1753 = vmatpush1.bf16.msra.mxu0 %v1716
        %1754 = vmatprep.subr.bf16.mxu0 0
        %1755 = vmatpush2.bf16.msra.mxu0 0
        %1756 = vmatprep.subr.bf16.mxu0 0
        %1757 = vmatpush2.bf16.msra.mxu0 0
        %1758 = vmatprep.subr.bf16.mxu0 0
        %1759 = vmatpush2.bf16.msra.mxu0 0
        %1760 = vmatprep.subr.bf16.mxu0 0
        %1761 = vmatpush2.bf16.msra.mxu0 0
        %1762 = vmatprep.subr.bf16.mxu0 0
        %1763 = vmatpush2.bf16.msra.mxu0 0
        %1764 = vmatprep.subr.bf16.mxu0 0
        %1765 = vmatpush2.bf16.msra.mxu0 0
        %1766 = vmatprep.subr.bf16.mxu0 0
        %1767 = vmatpush2.bf16.msra.mxu0 0
        %1768 = vmatprep.subr.bf16.mxu0 0
        %1769 = vmatpush2.bf16.msra.mxu0 0
        %1770 = vmatprep.mubr.bf16.mxu0 0
        %1771 = vmatmul.mubr.bf16.gmra.mxu0 %v1733
        %v1772 = vpop.f32.mrf.mxu0
        %v1773 = vadd.f32 0.0, %v1772
        %v1774 = vpop.f32.mrf.mxu0
        %v1775 = vadd.f32 0.0, %v1774
        %v1776 = vpop.f32.mrf.mxu0
        %v1777 = vadd.f32 0.0, %v1776
        %v1778 = vpop.f32.mrf.mxu0
        %v1779 = vadd.f32 0.0, %v1778
        %1780 = vmatprep.mubr.bf16.mxu0 0
        %1781 = vmatmul.mubr.bf16.gmra.mxu0 %v1736
        %v1782 = vpop.f32.mrf.mxu0
        %v1783 = vadd.f32 0.0, %v1782
        %v1784 = vpop.f32.mrf.mxu0
        %v1785 = vadd.f32 0.0, %v1784
        %v1786 = vpop.f32.mrf.mxu0
        %v1787 = vadd.f32 0.0, %v1786
        %v1788 = vpop.f32.mrf.mxu0
        %v1789 = vadd.f32 0.0, %v1788
        %1790 = vdwg.mxu0
        %v1791 = vpack.c.bf16 %v1777, %v1773
        %v1792 = vpack.c.bf16 %v1779, %v1775
        %v1793 = vpack.c.bf16 %v1787, %v1783
        %v1794 = vpack.c.bf16 %v1789, %v1785
        %v1799 = vunpack.c.l.b16 %v1791
        %v1800 = vunpack.c.l.b16 %v1792
        %v1801 = vunpack.c.h.b16 %v1791
        %v1802 = vunpack.c.h.b16 %v1792
        %v1803 = vunpack.c.l.b16 %v1793
        %v1804 = vunpack.c.l.b16 %v1794
        %v1805 = vunpack.c.h.b16 %v1793
        %v1806 = vunpack.c.h.b16 %v1794
        %v1807 = vpack.c.b16 %v1800, %v1799
        %v1808 = vpack.c.b16 %v1802, %v1801
        %v1809 = vpack.c.b16 %v1804, %v1803
        %v1810 = vpack.c.b16 %v1806, %v1805
        %1815 = vst [vmem:[#allocation2 + $0xe0] sm:$0xff] %v1807
        %1816 = vst [vmem:[#allocation2 + $0xe8] sm:$0xff] %v1808
        %1817 = vst [vmem:[#allocation2 + $0xf0] sm:$0xff] %v1809
        %1818 = vst [vmem:[#allocation2 + $0xf8] sm:$0xff] %v1810
        %v1819 = vld [vmem:[%s4] sm:$0xff]
        %v1820 = vld [vmem:[%s4 + $0x8] sm:$0xff]
        %v1821 = vld [vmem:[%s4 + $0x10] sm:$0xff]
        %v1822 = vld [vmem:[%s4 + $0x18] sm:$0xff]
        %v1823 = vld [vmem:[%s4 + $0x20] sm:$0xff]
        %v1824 = vld [vmem:[%s4 + $0x28] sm:$0xff]
        %v1825 = vld [vmem:[%s4 + $0x30] sm:$0xff]
        %v1826 = vld [vmem:[%s4 + $0x38] sm:$0xff]
        %v1827 = vld [vmem:[%s4 + $0x40] sm:$0xff]
        %v1828 = vld [vmem:[%s4 + $0x48] sm:$0xff]
        %v1829 = vld [vmem:[%s4 + $0x50] sm:$0xff]
        %v1830 = vld [vmem:[%s4 + $0x58] sm:$0xff]
        %v1831 = vld [vmem:[%s4 + $0x60] sm:$0xff]
        %v1832 = vld [vmem:[%s4 + $0x68] sm:$0xff]
        %v1833 = vld [vmem:[%s4 + $0x70] sm:$0xff]
        %v1834 = vld [vmem:[%s4 + $0x78] sm:$0xff]
        %v1835 = vld [vmem:[#allocation2] sm:$0xff]
        %v1836 = vld [vmem:[#allocation2 + $0x8] sm:$0xff]
        %v1837 = vld [vmem:[#allocation2 + $0x10] sm:$0xff]
        %v1838 = vld [vmem:[#allocation2 + $0x18] sm:$0xff]
        %v1839 = vld [vmem:[#allocation2 + $0x20] sm:$0xff]
        %v1840 = vld [vmem:[#allocation2 + $0x28] sm:$0xff]
        %v1841 = vld [vmem:[#allocation2 + $0x30] sm:$0xff]
        %v1842 = vld [vmem:[#allocation2 + $0x38] sm:$0xff]
        %v1843 = vld [vmem:[#allocation2 + $0x40] sm:$0xff]
        %v1844 = vld [vmem:[#allocation2 + $0x48] sm:$0xff]
        %v1845 = vld [vmem:[#allocation2 + $0x50] sm:$0xff]
        %v1846 = vld [vmem:[#allocation2 + $0x58] sm:$0xff]
        %v1847 = vld [vmem:[#allocation2 + $0x60] sm:$0xff]
        %v1848 = vld [vmem:[#allocation2 + $0x68] sm:$0xff]
        %v1849 = vld [vmem:[#allocation2 + $0x70] sm:$0xff]
        %v1850 = vld [vmem:[#allocation2 + $0x78] sm:$0xff]
        %v1851 = vld [vmem:[#allocation2 + $0x80] sm:$0xff]
        %v1852 = vld [vmem:[#allocation2 + $0x88] sm:$0xff]
        %v1853 = vld [vmem:[#allocation2 + $0x90] sm:$0xff]
        %v1854 = vld [vmem:[#allocation2 + $0x98] sm:$0xff]
        %v1855 = vld [vmem:[#allocation2 + $0xa0] sm:$0xff]
        %v1856 = vld [vmem:[#allocation2 + $0xa8] sm:$0xff]
        %v1857 = vld [vmem:[#allocation2 + $0xb0] sm:$0xff]
        %v1858 = vld [vmem:[#allocation2 + $0xb8] sm:$0xff]
        %v1859 = vld [vmem:[#allocation2 + $0xc0] sm:$0xff]
        %v1860 = vld [vmem:[#allocation2 + $0xc8] sm:$0xff]
        %v1861 = vld [vmem:[#allocation2 + $0xd0] sm:$0xff]
        %v1862 = vld [vmem:[#allocation2 + $0xd8] sm:$0xff]
        %v1863 = vld [vmem:[#allocation2 + $0xe0] sm:$0xff]
        %v1864 = vld [vmem:[#allocation2 + $0xe8] sm:$0xff]
        %v1865 = vld [vmem:[#allocation2 + $0xf0] sm:$0xff]
        %v1866 = vld [vmem:[#allocation2 + $0xf8] sm:$0xff]
        %v1867 = vld [vmem:[%s5] sm:$0xff]
        %v1868 = vld [vmem:[%s5 + $0x8] sm:$0xff]
        %v1869 = vld [vmem:[%s5 + $0x10] sm:$0xff]
        %v1870 = vld [vmem:[%s5 + $0x18] sm:$0xff]
        %v1871 = vld [vmem:[%s5 + $0x20] sm:$0xff]
        %v1872 = vld [vmem:[%s5 + $0x28] sm:$0xff]
        %v1873 = vld [vmem:[%s5 + $0x30] sm:$0xff]
        %v1874 = vld [vmem:[%s5 + $0x38] sm:$0xff]
        %v1875 = vld [vmem:[%s5 + $0x40] sm:$0xff]
        %v1876 = vld [vmem:[%s5 + $0x48] sm:$0xff]
        %v1877 = vld [vmem:[%s5 + $0x50] sm:$0xff]
        %v1878 = vld [vmem:[%s5 + $0x58] sm:$0xff]
        %v1879 = vld [vmem:[%s5 + $0x60] sm:$0xff]
        %v1880 = vld [vmem:[%s5 + $0x68] sm:$0xff]
        %v1881 = vld [vmem:[%s5 + $0x70] sm:$0xff]
        %v1882 = vld [vmem:[%s5 + $0x78] sm:$0xff]
        %1884 = vset.pattern.permute.xlu0 0
        %1885 = vperm.xlu0 %1884, %v1867
        %v1886 = vpop.permute.xlu0 %1885
        %1889 = vset.pattern.permute.xlu0 0
        %1890 = vperm.xlu0 %1889, %v1868
        %v1891 = vpop.permute.xlu0 %1890
        %1894 = vset.pattern.permute.xlu0 0
        %1895 = vperm.xlu0 %1894, %v1869
        %v1896 = vpop.permute.xlu0 %1895
        %1899 = vset.pattern.permute.xlu0 0
        %1900 = vperm.xlu0 %1899, %v1870
        %v1901 = vpop.permute.xlu0 %1900
        %1904 = vset.pattern.permute.xlu0 0
        %1905 = vperm.xlu0 %1904, %v1871
        %v1906 = vpop.permute.xlu0 %1905
        %1909 = vset.pattern.permute.xlu0 0
        %1910 = vperm.xlu0 %1909, %v1872
        %v1911 = vpop.permute.xlu0 %1910
        %1914 = vset.pattern.permute.xlu0 0
        %1915 = vperm.xlu0 %1914, %v1873
        %v1916 = vpop.permute.xlu0 %1915
        %1919 = vset.pattern.permute.xlu0 0
        %1920 = vperm.xlu0 %1919, %v1874
        %v1921 = vpop.permute.xlu0 %1920
        %1924 = vset.pattern.permute.xlu0 0
        %1925 = vperm.xlu0 %1924, %v1875
        %v1926 = vpop.permute.xlu0 %1925
        %1929 = vset.pattern.permute.xlu0 0
        %1930 = vperm.xlu0 %1929, %v1876
        %v1931 = vpop.permute.xlu0 %1930
        %1934 = vset.pattern.permute.xlu0 0
        %1935 = vperm.xlu0 %1934, %v1877
        %v1936 = vpop.permute.xlu0 %1935
        %1939 = vset.pattern.permute.xlu0 0
        %1940 = vperm.xlu0 %1939, %v1878
        %v1941 = vpop.permute.xlu0 %1940
        %1944 = vset.pattern.permute.xlu0 0
        %1945 = vperm.xlu0 %1944, %v1879
        %v1946 = vpop.permute.xlu0 %1945
        %1949 = vset.pattern.permute.xlu0 0
        %1950 = vperm.xlu0 %1949, %v1880
        %v1951 = vpop.permute.xlu0 %1950
        %1954 = vset.pattern.permute.xlu0 0
        %1955 = vperm.xlu0 %1954, %v1881
        %v1956 = vpop.permute.xlu0 %1955
        %1959 = vset.pattern.permute.xlu0 0
        %1960 = vperm.xlu0 %1959, %v1882
        %v1961 = vpop.permute.xlu0 %1960
        %v1979 = vunpack.c.l.b16 %v1819
        %v1980 = vunpack.c.h.b16 %v1819
        %v1981 = vunpack.c.l.b16 %v1820
        %v1982 = vunpack.c.h.b16 %v1820
        %v1983 = vunpack.c.l.b16 %v1821
        %v1984 = vunpack.c.h.b16 %v1821
        %v1985 = vunpack.c.l.b16 %v1822
        %v1986 = vunpack.c.h.b16 %v1822
        %v1987 = vunpack.c.l.b16 %v1823
        %v1988 = vunpack.c.h.b16 %v1823
        %v1989 = vunpack.c.l.b16 %v1824
        %v1990 = vunpack.c.h.b16 %v1824
        %v1991 = vunpack.c.l.b16 %v1825
        %v1992 = vunpack.c.h.b16 %v1825
        %v1993 = vunpack.c.l.b16 %v1826
        %v1994 = vunpack.c.h.b16 %v1826
        %v1995 = vunpack.c.l.b16 %v1827
        %v1996 = vunpack.c.h.b16 %v1827
        %v1997 = vunpack.c.l.b16 %v1828
        %v1998 = vunpack.c.h.b16 %v1828
        %v1999 = vunpack.c.l.b16 %v1829
        %v2000 = vunpack.c.h.b16 %v1829
        %v2001 = vunpack.c.l.b16 %v1830
        %v2002 = vunpack.c.h.b16 %v1830
        %v2003 = vunpack.c.l.b16 %v1831
        %v2004 = vunpack.c.h.b16 %v1831
        %v2005 = vunpack.c.l.b16 %v1832
        %v2006 = vunpack.c.h.b16 %v1832
        %v2007 = vunpack.c.l.b16 %v1833
        %v2008 = vunpack.c.h.b16 %v1833
        %v2009 = vunpack.c.l.b16 %v1834
        %v2010 = vunpack.c.h.b16 %v1834
        %v2011 = vpack.c.b16 %v1981, %v1979
        %v2012 = vpack.c.b16 %v1982, %v1980
        %v2013 = vpack.c.b16 %v1985, %v1983
        %v2014 = vpack.c.b16 %v1986, %v1984
        %v2015 = vpack.c.b16 %v1989, %v1987
        %v2016 = vpack.c.b16 %v1990, %v1988
        %v2017 = vpack.c.b16 %v1993, %v1991
        %v2018 = vpack.c.b16 %v1994, %v1992
        %v2019 = vpack.c.b16 %v1997, %v1995
        %v2020 = vpack.c.b16 %v1998, %v1996
        %v2021 = vpack.c.b16 %v2001, %v1999
        %v2022 = vpack.c.b16 %v2002, %v2000
        %v2023 = vpack.c.b16 %v2005, %v2003
        %v2024 = vpack.c.b16 %v2006, %v2004
        %v2025 = vpack.c.b16 %v2009, %v2007
        %v2026 = vpack.c.b16 %v2010, %v2008
        %v2075 = vunpack.c.l.b16 %v1835
        %v2076 = vunpack.c.h.b16 %v1835
        %v2077 = vunpack.c.l.b16 %v1836
        %v2078 = vunpack.c.h.b16 %v1836
        %v2079 = vunpack.c.l.b16 %v1837
        %v2080 = vunpack.c.h.b16 %v1837
        %v2081 = vunpack.c.l.b16 %v1838
        %v2082 = vunpack.c.h.b16 %v1838
        %v2083 = vunpack.c.l.b16 %v1839
        %v2084 = vunpack.c.h.b16 %v1839
        %v2085 = vunpack.c.l.b16 %v1840
        %v2086 = vunpack.c.h.b16 %v1840
        %v2087 = vunpack.c.l.b16 %v1841
        %v2088 = vunpack.c.h.b16 %v1841
        %v2089 = vunpack.c.l.b16 %v1842
        %v2090 = vunpack.c.h.b16 %v1842
        %v2091 = vunpack.c.l.b16 %v1843
        %v2092 = vunpack.c.h.b16 %v1843
        %v2093 = vunpack.c.l.b16 %v1844
        %v2094 = vunpack.c.h.b16 %v1844
        %v2095 = vunpack.c.l.b16 %v1845
        %v2096 = vunpack.c.h.b16 %v1845
        %v2097 = vunpack.c.l.b16 %v1846
        %v2098 = vunpack.c.h.b16 %v1846
        %v2099 = vunpack.c.l.b16 %v1847
        %v2100 = vunpack.c.h.b16 %v1847
        %v2101 = vunpack.c.l.b16 %v1848
        %v2102 = vunpack.c.h.b16 %v1848
        %v2103 = vunpack.c.l.b16 %v1849
        %v2104 = vunpack.c.h.b16 %v1849
        %v2105 = vunpack.c.l.b16 %v1850
        %v2106 = vunpack.c.h.b16 %v1850
        %v2107 = vunpack.c.l.b16 %v1851
        %v2108 = vunpack.c.h.b16 %v1851
        %v2109 = vunpack.c.l.b16 %v1852
        %v2110 = vunpack.c.h.b16 %v1852
        %v2111 = vunpack.c.l.b16 %v1853
        %v2112 = vunpack.c.h.b16 %v1853
        %v2113 = vunpack.c.l.b16 %v1854
        %v2114 = vunpack.c.h.b16 %v1854
        %v2115 = vunpack.c.l.b16 %v1855
        %v2116 = vunpack.c.h.b16 %v1855
        %v2117 = vunpack.c.l.b16 %v1856
        %v2118 = vunpack.c.h.b16 %v1856
        %v2119 = vunpack.c.l.b16 %v1857
        %v2120 = vunpack.c.h.b16 %v1857
        %v2121 = vunpack.c.l.b16 %v1858
        %v2122 = vunpack.c.h.b16 %v1858
        %v2123 = vunpack.c.l.b16 %v1859
        %v2124 = vunpack.c.h.b16 %v1859
        %v2125 = vunpack.c.l.b16 %v1860
        %v2126 = vunpack.c.h.b16 %v1860
        %v2127 = vunpack.c.l.b16 %v1861
        %v2128 = vunpack.c.h.b16 %v1861
        %v2129 = vunpack.c.l.b16 %v1862
        %v2130 = vunpack.c.h.b16 %v1862
        %v2131 = vunpack.c.l.b16 %v1863
        %v2132 = vunpack.c.h.b16 %v1863
        %v2133 = vunpack.c.l.b16 %v1864
        %v2134 = vunpack.c.h.b16 %v1864
        %v2135 = vunpack.c.l.b16 %v1865
        %v2136 = vunpack.c.h.b16 %v1865
        %v2137 = vunpack.c.l.b16 %v1866
        %v2138 = vunpack.c.h.b16 %v1866
        %v2139 = vpack.c.b16 %v2077, %v2075
        %v2140 = vpack.c.b16 %v2078, %v2076
        %v2141 = vpack.c.b16 %v2081, %v2079
        %v2142 = vpack.c.b16 %v2082, %v2080
        %v2143 = vpack.c.b16 %v2085, %v2083
        %v2144 = vpack.c.b16 %v2086, %v2084
        %v2145 = vpack.c.b16 %v2089, %v2087
        %v2146 = vpack.c.b16 %v2090, %v2088
        %v2147 = vpack.c.b16 %v2093, %v2091
        %v2148 = vpack.c.b16 %v2094, %v2092
        %v2149 = vpack.c.b16 %v2097, %v2095
        %v2150 = vpack.c.b16 %v2098, %v2096
        %v2151 = vpack.c.b16 %v2101, %v2099
        %v2152 = vpack.c.b16 %v2102, %v2100
        %v2153 = vpack.c.b16 %v2105, %v2103
        %v2154 = vpack.c.b16 %v2106, %v2104
        %v2155 = vpack.c.b16 %v2109, %v2107
        %v2156 = vpack.c.b16 %v2110, %v2108
        %v2157 = vpack.c.b16 %v2113, %v2111
        %v2158 = vpack.c.b16 %v2114, %v2112
        %v2159 = vpack.c.b16 %v2117, %v2115
        %v2160 = vpack.c.b16 %v2118, %v2116
        %v2161 = vpack.c.b16 %v2121, %v2119
        %v2162 = vpack.c.b16 %v2122, %v2120
        %v2163 = vpack.c.b16 %v2125, %v2123
        %v2164 = vpack.c.b16 %v2126, %v2124
        %v2165 = vpack.c.b16 %v2129, %v2127
        %v2166 = vpack.c.b16 %v2130, %v2128
        %v2167 = vpack.c.b16 %v2133, %v2131
        %v2168 = vpack.c.b16 %v2134, %v2132
        %v2169 = vpack.c.b16 %v2137, %v2135
        %v2170 = vpack.c.b16 %v2138, %v2136
        %2203 = vmatprep.subr.bf16.mxu0 %v2154
        %2204 = vmatpush1.bf16.msra.mxu0 %v2153
        %2205 = vmatprep.subr.bf16.mxu0 %v2152
        %2206 = vmatpush1.bf16.msra.mxu0 %v2151
        %2207 = vmatprep.subr.bf16.mxu0 %v2150
        %2208 = vmatpush1.bf16.msra.mxu0 %v2149
        %2209 = vmatprep.subr.bf16.mxu0 %v2148
        %2210 = vmatpush1.bf16.msra.mxu0 %v2147
        %2211 = vmatprep.subr.bf16.mxu0 %v2146
        %2212 = vmatpush1.bf16.msra.mxu0 %v2145
        %2213 = vmatprep.subr.bf16.mxu0 %v2144
        %2214 = vmatpush1.bf16.msra.mxu0 %v2143
        %2215 = vmatprep.subr.bf16.mxu0 %v2142
        %2216 = vmatpush1.bf16.msra.mxu0 %v2141
        %2217 = vmatprep.subr.bf16.mxu0 %v2140
        %2218 = vmatpush1.bf16.msra.mxu0 %v2139
        %2219 = vmatprep.subr.bf16.mxu0 %v2170
        %2220 = vmatpush2.bf16.msra.mxu0 %v2169
        %2221 = vmatprep.subr.bf16.mxu0 %v2168
        %2222 = vmatpush2.bf16.msra.mxu0 %v2167
        %2223 = vmatprep.subr.bf16.mxu0 %v2166
        %2224 = vmatpush2.bf16.msra.mxu0 %v2165
        %2225 = vmatprep.subr.bf16.mxu0 %v2164
        %2226 = vmatpush2.bf16.msra.mxu0 %v2163
        %2227 = vmatprep.subr.bf16.mxu0 %v2162
        %2228 = vmatpush2.bf16.msra.mxu0 %v2161
        %2229 = vmatprep.subr.bf16.mxu0 %v2160
        %2230 = vmatpush2.bf16.msra.mxu0 %v2159
        %2231 = vmatprep.subr.bf16.mxu0 %v2158
        %2232 = vmatpush2.bf16.msra.mxu0 %v2157
        %2233 = vmatprep.subr.bf16.mxu0 %v2156
        %2234 = vmatpush2.bf16.msra.mxu0 %v2155
        %2235 = vmatprep.mubr.bf16.mxu0 %v2012
        %2236 = vmatmul.mubr.bf16.gmra.mxu0 %v2011
        %v2237 = vpop.f32.mrf.mxu0
        %v2238 = vadd.f32 %v1886, %v2237
        %v2239 = vpop.f32.mrf.mxu0
        %v2240 = vadd.f32 %v1886, %v2239
        %v2241 = vpop.f32.mrf.mxu0
        %v2242 = vadd.f32 %v1891, %v2241
        %v2243 = vpop.f32.mrf.mxu0
        %v2244 = vadd.f32 %v1891, %v2243
        %2245 = vmatprep.mubr.bf16.mxu0 %v2014
        %2246 = vmatmul.mubr.bf16.gmra.mxu0 %v2013
        %v2247 = vpop.f32.mrf.mxu0
        %v2248 = vadd.f32 %v1896, %v2247
        %v2249 = vpop.f32.mrf.mxu0
        %v2250 = vadd.f32 %v1896, %v2249
        %v2251 = vpop.f32.mrf.mxu0
        %v2252 = vadd.f32 %v1901, %v2251
        %v2253 = vpop.f32.mrf.mxu0
        %v2254 = vadd.f32 %v1901, %v2253
        %2255 = vmatprep.mubr.bf16.mxu0 %v2016
        %2256 = vmatmul.mubr.bf16.gmra.mxu0 %v2015
        %v2257 = vpop.f32.mrf.mxu0
        %v2258 = vadd.f32 %v1906, %v2257
        %v2259 = vpop.f32.mrf.mxu0
        %v2260 = vadd.f32 %v1906, %v2259
        %v2261 = vpop.f32.mrf.mxu0
        %v2262 = vadd.f32 %v1911, %v2261
        %v2263 = vpop.f32.mrf.mxu0
        %v2264 = vadd.f32 %v1911, %v2263
        %2265 = vmatprep.mubr.bf16.mxu0 %v2018
        %2266 = vmatmul.mubr.bf16.gmra.mxu0 %v2017
        %v2267 = vpop.f32.mrf.mxu0
        %v2268 = vadd.f32 %v1916, %v2267
        %v2269 = vpop.f32.mrf.mxu0
        %v2270 = vadd.f32 %v1916, %v2269
        %v2271 = vpop.f32.mrf.mxu0
        %v2272 = vadd.f32 %v1921, %v2271
        %v2273 = vpop.f32.mrf.mxu0
        %v2274 = vadd.f32 %v1921, %v2273
        %2275 = vmatprep.mubr.bf16.mxu0 %v2020
        %2276 = vmatmul.mubr.bf16.gmra.mxu0 %v2019
        %v2277 = vpop.f32.mrf.mxu0
        %v2278 = vadd.f32 %v1926, %v2277
        %v2279 = vpop.f32.mrf.mxu0
        %v2280 = vadd.f32 %v1926, %v2279
        %v2281 = vpop.f32.mrf.mxu0
        %v2282 = vadd.f32 %v1931, %v2281
        %v2283 = vpop.f32.mrf.mxu0
        %v2284 = vadd.f32 %v1931, %v2283
        %2285 = vmatprep.mubr.bf16.mxu0 %v2022
        %2286 = vmatmul.mubr.bf16.gmra.mxu0 %v2021
        %v2287 = vpop.f32.mrf.mxu0
        %v2288 = vadd.f32 %v1936, %v2287
        %v2289 = vpop.f32.mrf.mxu0
        %v2290 = vadd.f32 %v1936, %v2289
        %v2291 = vpop.f32.mrf.mxu0
        %v2292 = vadd.f32 %v1941, %v2291
        %v2293 = vpop.f32.mrf.mxu0
        %v2294 = vadd.f32 %v1941, %v2293
        %2295 = vmatprep.mubr.bf16.mxu0 %v2024
        %2296 = vmatmul.mubr.bf16.gmra.mxu0 %v2023
        %v2297 = vpop.f32.mrf.mxu0
        %v2298 = vadd.f32 %v1946, %v2297
        %v2299 = vpop.f32.mrf.mxu0
        %v2300 = vadd.f32 %v1946, %v2299
        %v2301 = vpop.f32.mrf.mxu0
        %v2302 = vadd.f32 %v1951, %v2301
        %v2303 = vpop.f32.mrf.mxu0
        %v2304 = vadd.f32 %v1951, %v2303
        %2305 = vmatprep.mubr.bf16.mxu0 %v2026
        %2306 = vmatmul.mubr.bf16.gmra.mxu0 %v2025
        %v2307 = vpop.f32.mrf.mxu0
        %v2308 = vadd.f32 %v1956, %v2307
        %v2309 = vpop.f32.mrf.mxu0
        %v2310 = vadd.f32 %v1956, %v2309
        %v2311 = vpop.f32.mrf.mxu0
        %v2312 = vadd.f32 %v1961, %v2311
        %v2313 = vpop.f32.mrf.mxu0
        %v2314 = vadd.f32 %v1961, %v2313
        %2315 = vdwg.mxu0
        %2316 = vst [vmem:[%s244] sm:$0xff] %v2238
        %2317 = vst [vmem:[%s244 + $0x8] sm:$0xff] %v2240
        %2318 = vst [vmem:[%s244 + $0x10] sm:$0xff] %v2242
        %2319 = vst [vmem:[%s244 + $0x18] sm:$0xff] %v2244
        %2320 = vst [vmem:[%s244 + $0x20] sm:$0xff] %v2248
        %2321 = vst [vmem:[%s244 + $0x28] sm:$0xff] %v2250
        %2322 = vst [vmem:[%s244 + $0x30] sm:$0xff] %v2252
        %2323 = vst [vmem:[%s244 + $0x38] sm:$0xff] %v2254
        %2324 = vst [vmem:[%s244 + $0x40] sm:$0xff] %v2258
        %2325 = vst [vmem:[%s244 + $0x48] sm:$0xff] %v2260
        %2326 = vst [vmem:[%s244 + $0x50] sm:$0xff] %v2262
        %2327 = vst [vmem:[%s244 + $0x58] sm:$0xff] %v2264
        %2328 = vst [vmem:[%s244 + $0x60] sm:$0xff] %v2268
        %2329 = vst [vmem:[%s244 + $0x68] sm:$0xff] %v2270
        %2330 = vst [vmem:[%s244 + $0x70] sm:$0xff] %v2272
        %2331 = vst [vmem:[%s244 + $0x78] sm:$0xff] %v2274
        %2332 = vst [vmem:[%s244 + $0x80] sm:$0xff] %v2278
        %2333 = vst [vmem:[%s244 + $0x88] sm:$0xff] %v2280
        %2334 = vst [vmem:[%s244 + $0x90] sm:$0xff] %v2282
        %2335 = vst [vmem:[%s244 + $0x98] sm:$0xff] %v2284
        %2336 = vst [vmem:[%s244 + $0xa0] sm:$0xff] %v2288
        %2337 = vst [vmem:[%s244 + $0xa8] sm:$0xff] %v2290
        %2338 = vst [vmem:[%s244 + $0xb0] sm:$0xff] %v2292
        %2339 = vst [vmem:[%s244 + $0xb8] sm:$0xff] %v2294
        %2340 = vst [vmem:[%s244 + $0xc0] sm:$0xff] %v2298
        %2341 = vst [vmem:[%s244 + $0xc8] sm:$0xff] %v2300
        %2342 = vst [vmem:[%s244 + $0xd0] sm:$0xff] %v2302
        %2343 = vst [vmem:[%s244 + $0xd8] sm:$0xff] %v2304
        %2344 = vst [vmem:[%s244 + $0xe0] sm:$0xff] %v2308
        %2345 = vst [vmem:[%s244 + $0xe8] sm:$0xff] %v2310
        %2346 = vst [vmem:[%s244 + $0xf0] sm:$0xff] %v2312
        %2347 = vst [vmem:[%s244 + $0xf8] sm:$0xff] %v2314
        %s2348 = sand.u32 %s159, 1
        %s2349 = scalar_lea.sflag [#allocation4], %s2348
        %s2350 = sand.u32 %s159, 1
        %s2351 = smul.addr %s2350, 256
        %s2352 = scalar_lea.vmem [#allocation3], %s2351
        // Predicated region
        $region45: #{tpu_custom_call.1} parent=43 // pred_check
          %p2353 = pneg %p169
        $region46: #{tpu_custom_call.1} parent=43 // pred_check_branch
          %2355 = sbr.rel (%p2353) target = $region48
        $region47: #{tpu_custom_call.1} parent=43 // pred_region
          %s2357 = ssub.s32 4096, 4096
          %2358 = vsyncadd %s2349, %s2357
          %s2359 = smul.addr %s20, 32
          %s2360 = smul.addr %s2359, 128
          %s2361 = scalar_lea.hbm %s6, %s2360
          %s2362 = sshll.u32 %s2352, 4
          %s2363 = int_to_ptr.vmem [resolvable:$true] %s2362
          %2368 = dma.vmem_to_hbm [thread:$0]  %s2363, 4096, %s2361, %s2349, 256, 256, 16
        $region48: #{tpu_custom_call.1} parent=43 // pred_fallthru
          _
      $region44: #{tpu_custom_call.1} parent=5 // pred_fallthru
        _
      %p2369 = scmp.le.s32.totalorder 2, %s15
      // Predicated region
      $region49: #{tpu_custom_call.1} parent=5 // pred_check
        %p2370 = pneg %p2369
      $region50: #{tpu_custom_call.1} parent=5 // pred_check_branch
        %2372 = sbr.rel (%p2370) target = $region52
      $region51: #{tpu_custom_call.1} parent=5 // pred_region
        %s2373 = ssub.s32 %s15, 2
        // Predicated region
        $region53: #{tpu_custom_call.1} parent=51 // pred_check
          %p2374 = pneg %p175
        $region54: #{tpu_custom_call.1} parent=51 // pred_check_branch
          %2376 = sbr.rel (%p2374) target = $region56
        $region55: #{tpu_custom_call.1} parent=51 // pred_region
          %s2377 = sand.u32 %s160, 1
          %s2378 = scalar_lea.sflag [#allocation4], %s2377
          %s2379 = sand.u32 %s160, 1
          %s2380 = smul.addr %s2379, 256
          %s2381 = scalar_lea.vmem [#allocation3], %s2380
          %2382 = dma.done %s2378, 4096
        $region56: #{tpu_custom_call.1} parent=51 // pred_fallthru
          _
      $region52: #{tpu_custom_call.1} parent=5 // pred_fallthru
        _
    $region6: #{tpu_custom_call.1} parent=1 // loop_footer
      %s19 = sadd.s32 1, %s15
    $region7: #{tpu_custom_call.1} parent=1 // loop_footer_branch
      %14 = sbr.rel target = $region3
    $region8: #{tpu_custom_call.1} parent=1 // loop_exit
      _
    %2383 = vsyncpa [#allocation4], 1
    %s2384 = scalar_lea.sflag [#allocation4], 1
    %2385 = vsyncpa %s2384, 1

</llo_original>
